<compile_context>
chip_gen: v5e
topology: v5e:2x2
jax: 0.10.0
libtpu: 0.0.40
codegen_flags: <defaults>
</compile_context>

<pallas_src>
import jax
import jax.numpy as jnp
from jax import lax
from jax.experimental import pallas as pl
from jax.experimental.pallas import tpu as pltpu

EPS = 1e-12          # F.normalize eps
NEG_SLOPE = 0.01     # F.leaky_relu default negative_slope

_VMEM_BUDGET_CAP = 48 * 1024 * 1024     # leaves headroom on v7x's 64 MiB/TC VMEM
_FALLBACK_VMEM_CAP = 64 * 1024 * 1024   # conservative fallback if query fails


# --------------------------------------------------------------------------
# VMEM-aware tiling helpers
# --------------------------------------------------------------------------
def _vmem_budget_bytes():
    """Scoped-VMEM budget, used both for tile sizing and vmem_limit_bytes."""
    try:
        cap = int(pltpu.get_tpu_info().vmem_capacity_bytes)
    except Exception:
        cap = _FALLBACK_VMEM_CAP
    return int(min(cap * 3 // 4, _VMEM_BUDGET_CAP))


def _choose_tile_n(N, D, n_streams, budget):
    """Largest node tile (multiple of 128) whose double-buffered blocks fit in
    half the VMEM budget, while keeping >=2 grid steps when N allows."""
    if N <= 128:
        return N                                   # single full-array block
    bytes_per_row = n_streams * D * 4 * 2          # f32 blocks, double-buffered
    t = (budget // 2) // max(bytes_per_row, 1)
    t = max(128, min(int(t), 4096))
    t = (t // 128) * 128
    # Keep at least 2 grid steps so dimension_semantics=("parallel",) can shard
    # across TensorCores (v7x has 2 TCs per chip).
    half = max(128, (((N + 1) // 2 + 127) // 128) * 128)
    return min(t, half)


def _vmem_limit_bytes(tile_n, D, n_streams, budget):
    """Request ~2x the pipelined block footprint (16 MiB floor, budget cap)."""
    footprint = n_streams * tile_n * D * 4 * 2
    return int(min(budget, max(2 * footprint, 16 * 1024 * 1024)))


# --------------------------------------------------------------------------
# Kernels
# --------------------------------------------------------------------------
def _make_att_kernel(L):
    """ATT kernel over one tile of TN nodes; levels arrive as L separate refs.

    All math is per-node (row-wise); no cross-row reductions, so a partial
    last block is safe (garbage rows never leak into valid rows).
    """
    def kernel(*refs):
        x_refs = refs[:L]                                # L x (TN, D)
        wm_ref, wq_ref, b_ref = refs[L], refs[L + 1], refs[L + 2]
        emb_ref, score_ref = refs[L + 3], refs[L + 4]

        wm = wm_ref[...].astype(jnp.float32)             # (1, D) message half
        wq = wq_ref[...].astype(jnp.float32)             # (1, D) query half
        b = b_ref[0]                                     # scalar bias (SMEM)

        # Query level: F.normalize(p=2, dim=-1, eps=1e-12) via rsqrt(max(ss, eps^2)).
        q = x_refs[0][...].astype(jnp.float32)           # (TN, D)
        qn = q * lax.rsqrt(
            jnp.maximum(jnp.sum(q * q, axis=-1, keepdims=True), EPS * EPS))
        s_q = jnp.sum(qn * wq, axis=-1, keepdims=True) + b   # (TN, 1)

        # Pass 1: per-level inverse norms + leaky_relu'd scores.  Only (TN,1)
        # columns are kept live across the softmax (message tiles are re-read
        # from VMEM in pass 2 to avoid vreg spills).
        invs, scores = [], []
        for l in range(1, L):
            m = x_refs[l][...].astype(jnp.float32)       # (TN, D)
            inv = lax.rsqrt(
                jnp.maximum(jnp.sum(m * m, axis=-1, keepdims=True), EPS * EPS))
            s = jnp.sum(m * wm, axis=-1, keepdims=True) * inv + s_q   # (TN, 1)
            s = jnp.where(s >= 0, s, NEG_SLOPE * s)      # leaky_relu
            invs.append(inv)
            scores.append(s)

        # Per-node softmax over the (L-1) message levels.
        s_max = scores[0]
        for s in scores[1:]:
            s_max = jnp.maximum(s_max, s)
        exps = [jnp.exp(s - s_max) for s in scores]
        denom = exps[0]
        for e in exps[1:]:
            denom = denom + e
        # EUP approximate reciprocal (denom >= 1) + one Newton step -> f32 accuracy.
        inv_denom = pl.reciprocal(denom, approx=True)
        inv_denom = inv_denom * (2.0 - denom * inv_denom)
        attn = [e * inv_denom for e in exps]             # each (TN, 1)

        # Pass 2: embedding = normalized_query + sum_l attn_l * normalized_msg_l.
        emb = qn
        for l in range(1, L):
            m = x_refs[l][...].astype(jnp.float32)       # re-read VMEM block
            emb = emb + (attn[l - 1] * invs[l - 1]) * m
        emb_ref[...] = emb.astype(emb_ref.dtype)

        # Lane-dense score output block: (L-1, TN), level-major rows.
        score_block = jnp.concatenate(attn, axis=1)      # (TN, L-1)
        score_ref[...] = jnp.transpose(score_block).astype(score_ref.dtype)

    return kernel


def _make_mean_kernel(L):
    def kernel(*refs):
        acc = refs[0][...].astype(jnp.float32)
        for l in range(1, L):
            acc = acc + refs[l][...].astype(jnp.float32)
        refs[L][...] = (acc * (1.0 / L)).astype(refs[L].dtype)
    return kernel


def _make_max_kernel(L):
    def kernel(*refs):
        acc = refs[0][...]
        for l in range(1, L):
            acc = jnp.maximum(acc, refs[l][...])
        refs[L][...] = acc.astype(refs[L].dtype)
    return kernel


# --------------------------------------------------------------------------
# Wrappers
# --------------------------------------------------------------------------
def merge_xs_att(xs, w_att, b_att, tile_n=None):
    """ATT mode. w_att: (1, 2*D) (nn.Linear weight), b_att: (1,)."""
    L = len(xs)
    assert L >= 2, "ATT mode requires at least two levels"
    N, D = xs[0].shape
    budget = _vmem_budget_bytes()
    n_streams = L + 1                                   # L inputs + emb output
    if tile_n is None:
        tile_n = _choose_tile_n(N, D, n_streams, budget)
    grid = (pl.cdiv(N, tile_n),)                        # partial last block OK

    wm = w_att[:, :D].astype(jnp.float32)   # concat order: [message, query]
    wq = w_att[:, D:].astype(jnp.float32)
    b = b_att.reshape(1).astype(jnp.float32)

    emb, score_ln = pl.pallas_call(
        _make_att_kernel(L),
        out_shape=(
            jax.ShapeDtypeStruct((N, D), xs[0].dtype),
            jax.ShapeDtypeStruct((L - 1, N), jnp.float32),
        ),
        grid_spec=pltpu.PrefetchScalarGridSpec(
            num_scalar_prefetch=0,
            grid=grid,
            in_specs=(
                [pl.BlockSpec((tile_n, D), lambda i: (i, 0)) for _ in range(L)]
                + [
                    pl.BlockSpec((1, D), lambda i: (0, 0)),
                    pl.BlockSpec((1, D), lambda i: (0, 0)),
                    pl.BlockSpec(memory_space=pltpu.MemorySpace.SMEM),
                ]
            ),
            out_specs=[
                pl.BlockSpec((tile_n, D), lambda i: (i, 0)),
                pl.BlockSpec((L - 1, tile_n), lambda i: (0, i)),
            ],
        ),
        compiler_params=pltpu.CompilerParams(
            dimension_semantics=("parallel",),
            vmem_limit_bytes=_vmem_limit_bytes(tile_n, D, n_streams, budget),
        ),
    )(*xs, wm, wq, b)

    # PyTorch returns score as a flat [(L-1)*N] vector in level-major order;
    # (L-1, N).reshape(-1) is already level-major.
    return emb, score_ln.reshape(-1)


def _merge_reduce(xs, make_kernel, tile_n=None):
    L = len(xs)
    N, D = xs[0].shape
    budget = _vmem_budget_bytes()
    n_streams = L + 1
    if tile_n is None:
        tile_n = _choose_tile_n(N, D, n_streams, budget)
    grid = (pl.cdiv(N, tile_n),)

    out = pl.pallas_call(
        make_kernel(L),
        out_shape=jax.ShapeDtypeStruct((N, D), xs[0].dtype),
        grid_spec=pltpu.PrefetchScalarGridSpec(
            num_scalar_prefetch=0,
            grid=grid,
            in_specs=[pl.BlockSpec((tile_n, D), lambda i: (i, 0)) for _ in range(L)],
            out_specs=pl.BlockSpec((tile_n, D), lambda i: (i, 0)),
        ),
        compiler_params=pltpu.CompilerParams(
            dimension_semantics=("parallel",),
            vmem_limit_bytes=_vmem_limit_bytes(tile_n, D, n_streams, budget),
        ),
    )(*xs)
    return out


def merge_xs(mode, xs, w_att=None, b_att=None):
    """Mirror of Merge_xs.forward: returns (embedding, score)."""
    if mode == "NONE":
        return xs[0], None
    if mode == "MEAN":
        return _merge_reduce(xs, _make_mean_kernel), None
    if mode == "MAX":
        return _merge_reduce(xs, _make_max_kernel), None
    if mode == "ATT":
        return merge_xs_att(xs, w_att, b_att)
    # TODO(synk): 'LSTM' mode (JumpingKnowledge lstm) not implemented in Pallas.
    raise NotImplementedError(mode)


# --------------------------------------------------------------------------
# Pure-JAX reference for the ATT mode (semantics of the PyTorch code)
# --------------------------------------------------------------------------
def merge_xs_att_ref(xs, w_att, b_att):
    L = len(xs)
    N, D = xs[0].shape
    q = xs[0]
    m = jnp.concatenate(xs[1:], axis=0)  # ((L-1)*N, D), level-major
    qn = q / jnp.maximum(jnp.linalg.norm(q, axis=-1, keepdims=True), EPS)
    mn = m / jnp.maximum(jnp.linalg.norm(m, axis=-1, keepdims=True), EPS)
    q_rep = jnp.tile(qn, (L - 1, 1))
    feat = jnp.concatenate([mn, q_rep], axis=-1)          # ((L-1)*N, 2D)
    s = feat @ w_att[0] + b_att[0]                        # ((L-1)*N,)
    s = jnp.where(s >= 0, s, NEG_SLOPE * s)
    s2 = s.reshape(L - 1, N)
    s2 = s2 - jnp.max(s2, axis=0, keepdims=True)
    e = jnp.exp(s2)
    attn = e / jnp.sum(e, axis=0, keepdims=True)          # (L-1, N)
    emb = qn + jnp.sum(attn[:, :, None] * mn.reshape(L - 1, N, D), axis=0)
    return emb, attn.reshape(-1)


# --------------------------------------------------------------------------
if __name__ == "__main__":
    key = jax.random.PRNGKey(0)

    # ---------------- Test 1: lane-friendly shapes ----------------
    N, D, L = 256, 128, 4
    keys = jax.random.split(key, L + 2)
    xs = [jax.random.normal(keys[i], (N, D), dtype=jnp.float32) for i in range(L)]

    bound = 1.0 / jnp.sqrt(2.0 * D)
    w_att = jax.random.uniform(keys[L], (1, 2 * D), jnp.float32, -bound, bound)
    b_att = jax.random.uniform(keys[L + 1], (1,), jnp.float32, -bound, bound)

    emb, score = merge_xs("ATT", xs, w_att, b_att)
    emb = jax.block_until_ready(emb)
    score = jax.block_until_ready(score)

    emb_ref, score_ref = merge_xs_att_ref(xs, w_att, b_att)
    assert jnp.allclose(emb, emb_ref, atol=2e-4, rtol=2e-4)
    assert jnp.allclose(score, score_ref, atol=2e-4, rtol=2e-4)

    emb_mean, _ = merge_xs("MEAN", xs)
    emb_mean = jax.block_until_ready(emb_mean)
    assert jnp.allclose(emb_mean, jnp.mean(jnp.stack(xs), axis=0), atol=1e-5)

    emb_max, _ = merge_xs("MAX", xs)
    emb_max = jax.block_until_ready(emb_max)
    assert jnp.allclose(emb_max, jnp.max(jnp.stack(xs), axis=0), atol=1e-6)

    emb_none, sc_none = merge_xs("NONE", xs)
    assert sc_none is None and jnp.allclose(emb_none, xs[0])

    # ------- Test 2: partial last block (N % tile_n != 0) + narrow D -------
    N2, D2, L2 = 200, 32, 3
    keys2 = jax.random.split(jax.random.PRNGKey(1), L2 + 2)
    xs2 = [jax.random.normal(keys2[i], (N2, D2), dtype=jnp.float32) for i in range(L2)]
    bound2 = 1.0 / jnp.sqrt(2.0 * D2)
    w_att2 = jax.random.uniform(keys2[L2], (1, 2 * D2), jnp.float32, -bound2, bound2)
    b_att2 = jax.random.uniform(keys2[L2 + 1], (1,), jnp.float32, -bound2, bound2)

    emb2, score2 = merge_xs("ATT", xs2, w_att2, b_att2)
    emb2 = jax.block_until_ready(emb2)
    score2 = jax.block_until_ready(score2)
    emb2_ref, score2_ref = merge_xs_att_ref(xs2, w_att2, b_att2)
    assert jnp.allclose(emb2, emb2_ref, atol=2e-4, rtol=2e-4)
    assert jnp.allclose(score2, score2_ref, atol=2e-4, rtol=2e-4)

    emb2_mean, _ = merge_xs("MEAN", xs2)
    emb2_mean = jax.block_until_ready(emb2_mean)
    assert jnp.allclose(emb2_mean, jnp.mean(jnp.stack(xs2), axis=0), atol=1e-5)

    print("KERNEL_OK")
</pallas_src>

<mosaic_0001>
module attributes {stable_mosaic.version = 11 : i64} {
  func.func @kernel(%arg0: i32, %arg1: memref<128x128xf32, #tpu.memory_space<vmem>>, %arg2: memref<128x128xf32, #tpu.memory_space<vmem>>, %arg3: memref<128x128xf32, #tpu.memory_space<vmem>>, %arg4: memref<128x128xf32, #tpu.memory_space<vmem>>, %arg5: memref<1x128xf32, #tpu.memory_space<vmem>>, %arg6: memref<1x128xf32, #tpu.memory_space<vmem>>, %arg7: memref<1xf32, #tpu.memory_space<smem>>, %arg8: memref<128x128xf32, #tpu.memory_space<vmem>>, %arg9: memref<3x128xf32, #tpu.memory_space<vmem>>) attributes {dimension_semantics = [#tpu.dimension_semantics<parallel>], iteration_bounds = array<i64: 2>, scalar_prefetch = 0 : i64, scratch_operands = 0 : i64, tpu.core_type = #tpu.core_type<tc>, window_params = [{transform_indices = @transform_0, window_bounds = array<i64: 128, 128>}, {transform_indices = @transform_1, window_bounds = array<i64: 128, 128>}, {transform_indices = @transform_2, window_bounds = array<i64: 128, 128>}, {transform_indices = @transform_3, window_bounds = array<i64: 128, 128>}, {pipeline_mode = #tpu.pipeline_mode<synchronous>, transform_indices = @transform_4, window_bounds = array<i64: 1, 128>}, {pipeline_mode = #tpu.pipeline_mode<synchronous>, transform_indices = @transform_5, window_bounds = array<i64: 1, 128>}, {transform_indices = @transform_6, window_bounds = array<i64: 1>}, {transform_indices = @transform_7, window_bounds = array<i64: 128, 128>}, {transform_indices = @transform_8, window_bounds = array<i64: 3, 128>}]} {
    %c0 = arith.constant 0 : index
    %c0_0 = arith.constant 0 : index
    %0 = vector.load %arg5[%c0, %c0_0] : memref<1x128xf32, #tpu.memory_space<vmem>>, vector<1x128xf32>
    %c0_1 = arith.constant 0 : index
    %c0_2 = arith.constant 0 : index
    %1 = vector.load %arg6[%c0_1, %c0_2] : memref<1x128xf32, #tpu.memory_space<vmem>>, vector<1x128xf32>
    %c0_3 = arith.constant 0 : index
    %2 = memref.load %arg7[%c0_3] : memref<1xf32, #tpu.memory_space<smem>>
    %c0_4 = arith.constant 0 : index
    %c0_5 = arith.constant 0 : index
    %3 = vector.load %arg1[%c0_4, %c0_5] : memref<128x128xf32, #tpu.memory_space<vmem>>, vector<128x128xf32>
    %4 = arith.mulf %3, %3 : vector<128x128xf32>
    %cst = arith.constant dense<0.000000e+00> : vector<128xf32>
    %5 = vector.multi_reduction <add>, %4, %cst [1] : vector<128x128xf32> to vector<128xf32>
    %6 = vector.shape_cast %5 : vector<128xf32> to vector<128x1xf32>
    %cst_6 = arith.constant 1.000000e-24 : f32
    %7 = vector.broadcast %cst_6 : f32 to vector<128x1xf32>
    %8 = arith.maximumf %6, %7 : vector<128x1xf32>
    %9 = math.rsqrt %8 : vector<128x1xf32>
    %10 = vector.broadcast %9 : vector<128x1xf32> to vector<128x128xf32>
    %11 = arith.mulf %3, %10 : vector<128x128xf32>
    %12 = vector.broadcast %1 : vector<1x128xf32> to vector<128x128xf32>
    %13 = arith.mulf %11, %12 : vector<128x128xf32>
    %cst_7 = arith.constant dense<0.000000e+00> : vector<128xf32>
    %14 = vector.multi_reduction <add>, %13, %cst_7 [1] : vector<128x128xf32> to vector<128xf32>
    %15 = vector.shape_cast %14 : vector<128xf32> to vector<128x1xf32>
    %16 = vector.broadcast %2 : f32 to vector<128x1xf32>
    %17 = arith.addf %15, %16 : vector<128x1xf32>
    %c0_8 = arith.constant 0 : index
    %c0_9 = arith.constant 0 : index
    %18 = vector.load %arg2[%c0_8, %c0_9] : memref<128x128xf32, #tpu.memory_space<vmem>>, vector<128x128xf32>
    %19 = arith.mulf %18, %18 : vector<128x128xf32>
    %cst_10 = arith.constant dense<0.000000e+00> : vector<128xf32>
    %20 = vector.multi_reduction <add>, %19, %cst_10 [1] : vector<128x128xf32> to vector<128xf32>
    %21 = vector.shape_cast %20 : vector<128xf32> to vector<128x1xf32>
    %cst_11 = arith.constant 1.000000e-24 : f32
    %22 = vector.broadcast %cst_11 : f32 to vector<128x1xf32>
    %23 = arith.maximumf %21, %22 : vector<128x1xf32>
    %24 = math.rsqrt %23 : vector<128x1xf32>
    %25 = vector.broadcast %0 : vector<1x128xf32> to vector<128x128xf32>
    %26 = arith.mulf %18, %25 : vector<128x128xf32>
    %cst_12 = arith.constant dense<0.000000e+00> : vector<128xf32>
    %27 = vector.multi_reduction <add>, %26, %cst_12 [1] : vector<128x128xf32> to vector<128xf32>
    %28 = vector.shape_cast %27 : vector<128xf32> to vector<128x1xf32>
    %29 = arith.mulf %28, %24 : vector<128x1xf32>
    %30 = arith.addf %29, %17 : vector<128x1xf32>
    %cst_13 = arith.constant 0.000000e+00 : f32
    %31 = vector.broadcast %cst_13 : f32 to vector<128x1xf32>
    %32 = arith.cmpf oge, %30, %31 : vector<128x1xf32>
    %cst_14 = arith.constant 0.00999999977 : f32
    %33 = vector.broadcast %cst_14 : f32 to vector<128x1xf32>
    %34 = arith.mulf %33, %30 : vector<128x1xf32>
    %35 = arith.select %32, %30, %34 : vector<128x1xi1>, vector<128x1xf32>
    %c0_15 = arith.constant 0 : index
    %c0_16 = arith.constant 0 : index
    %36 = vector.load %arg3[%c0_15, %c0_16] : memref<128x128xf32, #tpu.memory_space<vmem>>, vector<128x128xf32>
    %37 = arith.mulf %36, %36 : vector<128x128xf32>
    %cst_17 = arith.constant dense<0.000000e+00> : vector<128xf32>
    %38 = vector.multi_reduction <add>, %37, %cst_17 [1] : vector<128x128xf32> to vector<128xf32>
    %39 = vector.shape_cast %38 : vector<128xf32> to vector<128x1xf32>
    %cst_18 = arith.constant 1.000000e-24 : f32
    %40 = vector.broadcast %cst_18 : f32 to vector<128x1xf32>
    %41 = arith.maximumf %39, %40 : vector<128x1xf32>
    %42 = math.rsqrt %41 : vector<128x1xf32>
    %43 = vector.broadcast %0 : vector<1x128xf32> to vector<128x128xf32>
    %44 = arith.mulf %36, %43 : vector<128x128xf32>
    %cst_19 = arith.constant dense<0.000000e+00> : vector<128xf32>
    %45 = vector.multi_reduction <add>, %44, %cst_19 [1] : vector<128x128xf32> to vector<128xf32>
    %46 = vector.shape_cast %45 : vector<128xf32> to vector<128x1xf32>
    %47 = arith.mulf %46, %42 : vector<128x1xf32>
    %48 = arith.addf %47, %17 : vector<128x1xf32>
    %cst_20 = arith.constant 0.000000e+00 : f32
    %49 = vector.broadcast %cst_20 : f32 to vector<128x1xf32>
    %50 = arith.cmpf oge, %48, %49 : vector<128x1xf32>
    %cst_21 = arith.constant 0.00999999977 : f32
    %51 = vector.broadcast %cst_21 : f32 to vector<128x1xf32>
    %52 = arith.mulf %51, %48 : vector<128x1xf32>
    %53 = arith.select %50, %48, %52 : vector<128x1xi1>, vector<128x1xf32>
    %c0_22 = arith.constant 0 : index
    %c0_23 = arith.constant 0 : index
    %54 = vector.load %arg4[%c0_22, %c0_23] : memref<128x128xf32, #tpu.memory_space<vmem>>, vector<128x128xf32>
    %55 = arith.mulf %54, %54 : vector<128x128xf32>
    %cst_24 = arith.constant dense<0.000000e+00> : vector<128xf32>
    %56 = vector.multi_reduction <add>, %55, %cst_24 [1] : vector<128x128xf32> to vector<128xf32>
    %57 = vector.shape_cast %56 : vector<128xf32> to vector<128x1xf32>
    %cst_25 = arith.constant 1.000000e-24 : f32
    %58 = vector.broadcast %cst_25 : f32 to vector<128x1xf32>
    %59 = arith.maximumf %57, %58 : vector<128x1xf32>
    %60 = math.rsqrt %59 : vector<128x1xf32>
    %61 = vector.broadcast %0 : vector<1x128xf32> to vector<128x128xf32>
    %62 = arith.mulf %54, %61 : vector<128x128xf32>
    %cst_26 = arith.constant dense<0.000000e+00> : vector<128xf32>
    %63 = vector.multi_reduction <add>, %62, %cst_26 [1] : vector<128x128xf32> to vector<128xf32>
    %64 = vector.shape_cast %63 : vector<128xf32> to vector<128x1xf32>
    %65 = arith.mulf %64, %60 : vector<128x1xf32>
    %66 = arith.addf %65, %17 : vector<128x1xf32>
    %cst_27 = arith.constant 0.000000e+00 : f32
    %67 = vector.broadcast %cst_27 : f32 to vector<128x1xf32>
    %68 = arith.cmpf oge, %66, %67 : vector<128x1xf32>
    %cst_28 = arith.constant 0.00999999977 : f32
    %69 = vector.broadcast %cst_28 : f32 to vector<128x1xf32>
    %70 = arith.mulf %69, %66 : vector<128x1xf32>
    %71 = arith.select %68, %66, %70 : vector<128x1xi1>, vector<128x1xf32>
    %72 = arith.maximumf %35, %53 : vector<128x1xf32>
    %73 = arith.maximumf %72, %71 : vector<128x1xf32>
    %74 = arith.subf %35, %73 : vector<128x1xf32>
    %75 = math.exp %74 : vector<128x1xf32>
    %76 = arith.subf %53, %73 : vector<128x1xf32>
    %77 = math.exp %76 : vector<128x1xf32>
    %78 = arith.subf %71, %73 : vector<128x1xf32>
    %79 = math.exp %78 : vector<128x1xf32>
    %80 = arith.addf %75, %77 : vector<128x1xf32>
    %81 = arith.addf %80, %79 : vector<128x1xf32>
    %82 = tpu.reciprocal %81 {approx = true} : vector<128x1xf32> -> vector<128x1xf32>
    %83 = arith.mulf %81, %82 : vector<128x1xf32>
    %cst_29 = arith.constant 2.000000e+00 : f32
    %84 = vector.broadcast %cst_29 : f32 to vector<128x1xf32>
    %85 = arith.subf %84, %83 : vector<128x1xf32>
    %86 = arith.mulf %82, %85 : vector<128x1xf32>
    %87 = arith.mulf %75, %86 : vector<128x1xf32>
    %88 = arith.mulf %77, %86 : vector<128x1xf32>
    %89 = arith.mulf %79, %86 : vector<128x1xf32>
    %c0_30 = arith.constant 0 : index
    %c0_31 = arith.constant 0 : index
    %90 = vector.load %arg2[%c0_30, %c0_31] : memref<128x128xf32, #tpu.memory_space<vmem>>, vector<128x128xf32>
    %91 = arith.mulf %87, %24 : vector<128x1xf32>
    %92 = vector.broadcast %91 : vector<128x1xf32> to vector<128x128xf32>
    %93 = arith.mulf %92, %90 : vector<128x128xf32>
    %94 = arith.addf %11, %93 : vector<128x128xf32>
    %c0_32 = arith.constant 0 : index
    %c0_33 = arith.constant 0 : index
    %95 = vector.load %arg3[%c0_32, %c0_33] : memref<128x128xf32, #tpu.memory_space<vmem>>, vector<128x128xf32>
    %96 = arith.mulf %88, %42 : vector<128x1xf32>
    %97 = vector.broadcast %96 : vector<128x1xf32> to vector<128x128xf32>
    %98 = arith.mulf %97, %95 : vector<128x128xf32>
    %99 = arith.addf %94, %98 : vector<128x128xf32>
    %c0_34 = arith.constant 0 : index
    %c0_35 = arith.constant 0 : index
    %100 = vector.load %arg4[%c0_34, %c0_35] : memref<128x128xf32, #tpu.memory_space<vmem>>, vector<128x128xf32>
    %101 = arith.mulf %89, %60 : vector<128x1xf32>
    %102 = vector.broadcast %101 : vector<128x1xf32> to vector<128x128xf32>
    %103 = arith.mulf %102, %100 : vector<128x128xf32>
    %104 = arith.addf %99, %103 : vector<128x128xf32>
    %c0_36 = arith.constant 0 : index
    %c0_37 = arith.constant 0 : index
    %105 = vector.load %arg8[%c0_36, %c0_37] : memref<128x128xf32, #tpu.memory_space<vmem>>, vector<128x128xf32>
    tpu.vector_store %arg8[%c0_36, %c0_37], %104 {strides = array<i32>} : memref<128x128xf32, #tpu.memory_space<vmem>>, vector<128x128xf32>,
    %106 = tpu.concatenate %87, %88, %89 in 1 : vector<128x1xf32>, vector<128x1xf32>, vector<128x1xf32> -> vector<128x3xf32>
    %107 = tpu.transpose %106, [1, 0] : vector<128x3xf32> -> vector<3x128xf32>
    %c0_38 = arith.constant 0 : index
    %c0_39 = arith.constant 0 : index
    %108 = vector.load %arg9[%c0_38, %c0_39] : memref<3x128xf32, #tpu.memory_space<vmem>>, vector<3x128xf32>
    tpu.vector_store %arg9[%c0_38, %c0_39], %107 {strides = array<i32>} : memref<3x128xf32, #tpu.memory_space<vmem>>, vector<3x128xf32>,
    return
  }
  func.func @transform_0(%arg0: i32) -> (i32, i32) {
    %c0_i32 = arith.constant 0 : i32
    %c0_i32_0 = arith.constant 0 : i32
    return %arg0, %c0_i32 : i32, i32
  }
  func.func @transform_1(%arg0: i32) -> (i32, i32) {
    %c0_i32 = arith.constant 0 : i32
    %c0_i32_0 = arith.constant 0 : i32
    return %arg0, %c0_i32 : i32, i32
  }
  func.func @transform_2(%arg0: i32) -> (i32, i32) {
    %c0_i32 = arith.constant 0 : i32
    %c0_i32_0 = arith.constant 0 : i32
    return %arg0, %c0_i32 : i32, i32
  }
  func.func @transform_3(%arg0: i32) -> (i32, i32) {
    %c0_i32 = arith.constant 0 : i32
    %c0_i32_0 = arith.constant 0 : i32
    return %arg0, %c0_i32 : i32, i32
  }
  func.func @transform_4(%arg0: i32) -> (i32, i32) {
    %c0_i32 = arith.constant 0 : i32
    %c0_i32_0 = arith.constant 0 : i32
    %c0_i32_1 = arith.constant 0 : i32
    return %c0_i32, %c0_i32_0 : i32, i32
  }
  func.func @transform_5(%arg0: i32) -> (i32, i32) {
    %c0_i32 = arith.constant 0 : i32
    %c0_i32_0 = arith.constant 0 : i32
    %c0_i32_1 = arith.constant 0 : i32
    return %c0_i32, %c0_i32_0 : i32, i32
  }
  func.func @transform_6(%arg0: i32) -> i32 {
    %c0_i32 = arith.constant 0 : i32
    %c0_i32_0 = arith.constant 0 : i32
    return %c0_i32 : i32
  }
  func.func @transform_7(%arg0: i32) -> (i32, i32) {
    %c0_i32 = arith.constant 0 : i32
    %c0_i32_0 = arith.constant 0 : i32
    return %arg0, %c0_i32 : i32, i32
  }
  func.func @transform_8(%arg0: i32) -> (i32, i32) {
    %c0_i32 = arith.constant 0 : i32
    %c0_i32_0 = arith.constant 0 : i32
    return %c0_i32, %arg0 : i32, i32
  }
}

</mosaic_0001>

<llo_original>
// kernel: tpu_custom_call.1
$region0: #{tpu_custom_call.1}
  #allocation0 [shape = 'u32[]', space=smem, size = 0x4, offset = 0x4, fixed_abs, tag = 'smem constant byte address 0x4 - core index']
  #allocation1 [shape = 'u32[72,128]{1,0:T(1,128)}', space=vmem, size = 0x9000, scoped, tag = 'internal scratch']
  #allocation2 [shape = 'f32[1]{0:T(128)S(6)}', space=smem, size = 0x200, scoped, tag = 'scoped memory for tpu_custom_call.1']
  %s0 = inlined_call_operand.hbm [shape: f32[256,128], index: 0, kind: input, shape index: {}]
  %s1 = inlined_call_operand.hbm [shape: f32[256,128], index: 1, kind: input, shape index: {}]
  %s2 = inlined_call_operand.hbm [shape: f32[256,128], index: 2, kind: input, shape index: {}]
  %s3 = inlined_call_operand.hbm [shape: f32[256,128], index: 3, kind: input, shape index: {}]
  %s4 = inlined_call_operand.vmem [shape: f32[1,128], index: 4, kind: input, shape index: {}]
  %s5 = inlined_call_operand.vmem [shape: f32[1,128], index: 5, kind: input, shape index: {}]
  %s6 = inlined_call_operand.<no memory space> [shape: f32[1], index: 6, kind: input, shape index: {}]
  %s7 = inlined_call_operand.hbm [shape: f32[256,128], index: 7, kind: output, shape index: {0}]
  %s8 = inlined_call_operand.hbm [shape: f32[3,256], index: 8, kind: output, shape index: {1}]
  %9 = xla_tuple %s7, %s8
  %s10 = sld [smem:[#allocation0]]
  $region85: #{tpu_custom_call.1} parent=0
    _
  %s12 = ssub.s32 1, %s10
  %s13 = scalar_select 0, %s12, %s10
  %14 = sst [smem:[#allocation2]] %s6
  $region1: #{tpu_custom_call.1} parent=0
    #allocation3 [shape = 'u8[131072]{0}', space=vmem, size = 0x20000, scoped, tag = 'input window, operand 0']
    #allocation4 [shape = 's32[2]{0}', space=sflag, size = 0x8, scoped, tag = 'scoped memory for tpu_custom_call.1']
    #allocation5 [shape = 's32[2]{0}', space=sflag, size = 0x8, scoped, tag = 'scoped memory for tpu_custom_call.1']
    #allocation6 [shape = 'u8[131072]{0}', space=vmem, size = 0x20000, scoped, tag = 'input window, operand 1']
    #allocation7 [shape = 's32[2]{0}', space=sflag, size = 0x8, scoped, tag = 'scoped memory for tpu_custom_call.1']
    #allocation8 [shape = 'u8[131072]{0}', space=vmem, size = 0x20000, scoped, tag = 'input window, operand 2']
    #allocation9 [shape = 'u8[131072]{0}', space=vmem, size = 0x20000, scoped, tag = 'input window, operand 3']
    #allocation10 [shape = 's32[2]{0}', space=sflag, size = 0x8, scoped, tag = 'scoped memory for tpu_custom_call.1']
    #allocation11 [shape = 'u8[131072]{0}', space=vmem, size = 0x20000, scoped, tag = 'output window, operand 0']
    #allocation12 [shape = 'u8[4096]{0}', space=vmem, size = 0x1000, scoped, tag = 'output window, operand 1']
    #allocation13 [shape = 's32[2]{0}', space=sflag, size = 0x8, scoped, tag = 'scoped memory for tpu_custom_call.1']
    %15 = vsyncpa [#allocation4], 0
    %s16 = scalar_lea.sflag [#allocation4], 1
    %17 = vsyncpa %s16, 0
    %18 = vsyncpa [#allocation7], 0
    %s19 = scalar_lea.sflag [#allocation7], 1
    %20 = vsyncpa %s19, 0
    %21 = vsyncpa [#allocation10], 0
    %s22 = scalar_lea.sflag [#allocation10], 1
    %23 = vsyncpa %s22, 0
    %24 = vsyncpa [#allocation5], 0
    %s25 = scalar_lea.sflag [#allocation5], 1
    %26 = vsyncpa %s25, 0
    %27 = vsyncpa [#allocation13], 0
    %s28 = scalar_lea.sflag [#allocation13], 1
    %29 = vsyncpa %s28, 0
    loop: start=0, step=1, limit=4
    $region2: #{tpu_custom_call.1} parent=1 // loop_pre_header
      _
    $region3: #{tpu_custom_call.1} parent=1 // loop_header
      %s31 = sphi 0, %s35
      %p32 = scmp.ge.s32.totalorder %s31, 4
      %s41 = sphi 0, %s43
      %s44 = sphi 0, %s41
      %s45 = sphi 0, %s44
      %s61 = sphi 0, %s45
      %s67 = sphi 0, %s69
      %s70 = sphi 0, %s67
      %s71 = sphi 0, %s70
      %s87 = sphi 0, %s71
      %s93 = sphi 0, %s95
      %s96 = sphi 0, %s93
      %s97 = sphi 0, %s96
      %s113 = sphi 0, %s97
      %s119 = sphi 0, %s121
      %s122 = sphi 0, %s119
      %s123 = sphi 0, %s122
      %s139 = sphi 0, %s123
      %s143 = sphi 0, %s143
      %s145 = sphi 0, %s143
      %s146 = sphi 0, %s145
      %s160 = sphi 0, %s146
      %s164 = sphi 0, %s164
      %s166 = sphi 0, %s164
      %s167 = sphi 0, %s166
      %s181 = sphi 0, %s167
      %s185 = sphi 0, %s185
      %s187 = sphi 0, %s185
      %s188 = sphi 0, %s187
      %s202 = sphi 0, %s188
      %s208 = sphi 0, %s210
      %s211 = sphi 0, %s208
      %s212 = sphi 0, %s211
      %s228 = sphi 0, %s212
      %s234 = sphi 0, %s236
      %s237 = sphi 0, %s234
      %s238 = sphi 0, %s237
      %s254 = sphi 0, %s238
    $region4: #{tpu_custom_call.1} parent=1 // loop_header_branch
      %34 = sbr.rel (%p32) target = $region8
    $region5: #{tpu_custom_call.1} parent=1 // loop_body
      %s36 = ssub.s32 %s31, 1
      %s37 = ssub.s32 %s31, 2
      %s38 = sadd.s32 %s31, 1
      %s39 = ssub.s32 %s31, %s38
      %p40 = scmp.eq.s32.totalorder %s39, 0
      %s42 = sadd.s32 %s41, 1
      %s43 = scalar_select %p40, %s41, %s42
      %p46 = pneg %p40
      %p47 = scmp.eq.s32.totalorder %s31, 1
      %p48 = por %p46, %p47
      %p49 = scmp.ne.s32.totalorder %s41, %s44
      %p50 = scmp.eq.s32.totalorder %s31, 0
      %p51 = por %p49, %p50
      %p52 = scmp.ne.s32.totalorder %s41, %s44
      %p53 = scmp.eq.s32.totalorder %s36, 1
      %p54 = por %p52, %p53
      %p55 = scmp.ne.s32.totalorder %s44, %s45
      %p56 = scmp.eq.s32.totalorder %s36, 0
      %p57 = por %p55, %p56
      %p58 = scmp.ne.s32.totalorder %s44, %s45
      %p59 = scmp.eq.s32.totalorder %s37, 1
      %p60 = por %p58, %p59
      %p62 = scmp.ne.s32.totalorder %s45, %s61
      %p63 = scmp.eq.s32.totalorder %s37, 0
      %p64 = por %p62, %p63
      %s65 = ssub.s32 %s31, %s38
      %p66 = scmp.eq.s32.totalorder %s65, 0
      %s68 = sadd.s32 %s67, 1
      %s69 = scalar_select %p66, %s67, %s68
      %p72 = pneg %p66
      %p73 = scmp.eq.s32.totalorder %s31, 1
      %p74 = por %p72, %p73
      %p75 = scmp.ne.s32.totalorder %s67, %s70
      %p76 = scmp.eq.s32.totalorder %s31, 0
      %p77 = por %p75, %p76
      %p78 = scmp.ne.s32.totalorder %s67, %s70
      %p79 = scmp.eq.s32.totalorder %s36, 1
      %p80 = por %p78, %p79
      %p81 = scmp.ne.s32.totalorder %s70, %s71
      %p82 = scmp.eq.s32.totalorder %s36, 0
      %p83 = por %p81, %p82
      %p84 = scmp.ne.s32.totalorder %s70, %s71
      %p85 = scmp.eq.s32.totalorder %s37, 1
      %p86 = por %p84, %p85
      %p88 = scmp.ne.s32.totalorder %s71, %s87
      %p89 = scmp.eq.s32.totalorder %s37, 0
      %p90 = por %p88, %p89
      %s91 = ssub.s32 %s31, %s38
      %p92 = scmp.eq.s32.totalorder %s91, 0
      %s94 = sadd.s32 %s93, 1
      %s95 = scalar_select %p92, %s93, %s94
      %p98 = pneg %p92
      %p99 = scmp.eq.s32.totalorder %s31, 1
      %p100 = por %p98, %p99
      %p101 = scmp.ne.s32.totalorder %s93, %s96
      %p102 = scmp.eq.s32.totalorder %s31, 0
      %p103 = por %p101, %p102
      %p104 = scmp.ne.s32.totalorder %s93, %s96
      %p105 = scmp.eq.s32.totalorder %s36, 1
      %p106 = por %p104, %p105
      %p107 = scmp.ne.s32.totalorder %s96, %s97
      %p108 = scmp.eq.s32.totalorder %s36, 0
      %p109 = por %p107, %p108
      %p110 = scmp.ne.s32.totalorder %s96, %s97
      %p111 = scmp.eq.s32.totalorder %s37, 1
      %p112 = por %p110, %p111
      %p114 = scmp.ne.s32.totalorder %s97, %s113
      %p115 = scmp.eq.s32.totalorder %s37, 0
      %p116 = por %p114, %p115
      %s117 = ssub.s32 %s31, %s38
      %p118 = scmp.eq.s32.totalorder %s117, 0
      %s120 = sadd.s32 %s119, 1
      %s121 = scalar_select %p118, %s119, %s120
      %p124 = pneg %p118
      %p125 = scmp.eq.s32.totalorder %s31, 1
      %p126 = por %p124, %p125
      %p127 = scmp.ne.s32.totalorder %s119, %s122
      %p128 = scmp.eq.s32.totalorder %s31, 0
      %p129 = por %p127, %p128
      %p130 = scmp.ne.s32.totalorder %s119, %s122
      %p131 = scmp.eq.s32.totalorder %s36, 1
      %p132 = por %p130, %p131
      %p133 = scmp.ne.s32.totalorder %s122, %s123
      %p134 = scmp.eq.s32.totalorder %s36, 0
      %p135 = por %p133, %p134
      %p136 = scmp.ne.s32.totalorder %s122, %s123
      %p137 = scmp.eq.s32.totalorder %s37, 1
      %p138 = por %p136, %p137
      %p140 = scmp.ne.s32.totalorder %s123, %s139
      %p141 = scmp.eq.s32.totalorder %s37, 0
      %p142 = por %p140, %p141
      %s144 = sadd.s32 %s143, 1
      %p147 = scmp.eq.s32.totalorder %s31, 1
      %p148 = scmp.ne.s32.totalorder %s143, %s145
      %p149 = scmp.eq.s32.totalorder %s31, 0
      %p150 = por %p148, %p149
      %p151 = scmp.ne.s32.totalorder %s143, %s145
      %p152 = scmp.eq.s32.totalorder %s36, 1
      %p153 = por %p151, %p152
      %p154 = scmp.ne.s32.totalorder %s145, %s146
      %p155 = scmp.eq.s32.totalorder %s36, 0
      %p156 = por %p154, %p155
      %p157 = scmp.ne.s32.totalorder %s145, %s146
      %p158 = scmp.eq.s32.totalorder %s37, 1
      %p159 = por %p157, %p158
      %p161 = scmp.ne.s32.totalorder %s146, %s160
      %p162 = scmp.eq.s32.totalorder %s37, 0
      %p163 = por %p161, %p162
      %s165 = sadd.s32 %s164, 1
      %p168 = scmp.eq.s32.totalorder %s31, 1
      %p169 = scmp.ne.s32.totalorder %s164, %s166
      %p170 = scmp.eq.s32.totalorder %s31, 0
      %p171 = por %p169, %p170
      %p172 = scmp.ne.s32.totalorder %s164, %s166
      %p173 = scmp.eq.s32.totalorder %s36, 1
      %p174 = por %p172, %p173
      %p175 = scmp.ne.s32.totalorder %s166, %s167
      %p176 = scmp.eq.s32.totalorder %s36, 0
      %p177 = por %p175, %p176
      %p178 = scmp.ne.s32.totalorder %s166, %s167
      %p179 = scmp.eq.s32.totalorder %s37, 1
      %p180 = por %p178, %p179
      %p182 = scmp.ne.s32.totalorder %s167, %s181
      %p183 = scmp.eq.s32.totalorder %s37, 0
      %p184 = por %p182, %p183
      %s186 = sadd.s32 %s185, 1
      %p189 = scmp.eq.s32.totalorder %s31, 1
      %p190 = scmp.ne.s32.totalorder %s185, %s187
      %p191 = scmp.eq.s32.totalorder %s31, 0
      %p192 = por %p190, %p191
      %p193 = scmp.ne.s32.totalorder %s185, %s187
      %p194 = scmp.eq.s32.totalorder %s36, 1
      %p195 = por %p193, %p194
      %p196 = scmp.ne.s32.totalorder %s187, %s188
      %p197 = scmp.eq.s32.totalorder %s36, 0
      %p198 = por %p196, %p197
      %p199 = scmp.ne.s32.totalorder %s187, %s188
      %p200 = scmp.eq.s32.totalorder %s37, 1
      %p201 = por %p199, %p200
      %p203 = scmp.ne.s32.totalorder %s188, %s202
      %p204 = scmp.eq.s32.totalorder %s37, 0
      %p205 = por %p203, %p204
      %s206 = ssub.s32 %s31, %s38
      %p207 = scmp.eq.s32.totalorder %s206, 0
      %s209 = sadd.s32 %s208, 1
      %s210 = scalar_select %p207, %s208, %s209
      %p213 = pneg %p207
      %p214 = scmp.eq.s32.totalorder %s31, 1
      %p215 = por %p213, %p214
      %p216 = scmp.ne.s32.totalorder %s208, %s211
      %p217 = scmp.eq.s32.totalorder %s31, 0
      %p218 = por %p216, %p217
      %p219 = scmp.ne.s32.totalorder %s208, %s211
      %p220 = scmp.eq.s32.totalorder %s36, 1
      %p221 = por %p219, %p220
      %p222 = scmp.ne.s32.totalorder %s211, %s212
      %p223 = scmp.eq.s32.totalorder %s36, 0
      %p224 = por %p222, %p223
      %p225 = scmp.ne.s32.totalorder %s211, %s212
      %p226 = scmp.eq.s32.totalorder %s37, 1
      %p227 = por %p225, %p226
      %p229 = scmp.ne.s32.totalorder %s212, %s228
      %p230 = scmp.eq.s32.totalorder %s37, 0
      %p231 = por %p229, %p230
      %s232 = ssub.s32 %s31, %s38
      %p233 = scmp.eq.s32.totalorder %s232, 0
      %s235 = sadd.s32 %s234, 1
      %s236 = scalar_select %p233, %s234, %s235
      %p239 = pneg %p233
      %p240 = scmp.eq.s32.totalorder %s31, 1
      %p241 = por %p239, %p240
      %p242 = scmp.ne.s32.totalorder %s234, %s237
      %p243 = scmp.eq.s32.totalorder %s31, 0
      %p244 = por %p242, %p243
      %p245 = scmp.ne.s32.totalorder %s234, %s237
      %p246 = scmp.eq.s32.totalorder %s36, 1
      %p247 = por %p245, %p246
      %p248 = scmp.ne.s32.totalorder %s237, %s238
      %p249 = scmp.eq.s32.totalorder %s36, 0
      %p250 = por %p248, %p249
      %p251 = scmp.ne.s32.totalorder %s237, %s238
      %p252 = scmp.eq.s32.totalorder %s37, 1
      %p253 = por %p251, %p252
      %p255 = scmp.ne.s32.totalorder %s238, %s254
      %p256 = scmp.eq.s32.totalorder %s37, 0
      %p257 = por %p255, %p256
      %p258 = scmp.le.s32.totalorder 1, %s31
      %p259 = scmp.lt.s32.totalorder %s31, 3
      %p260 = pnand %p258, %p259
      %p261 = pneg %p260
      // Predicated region
      $region9: #{tpu_custom_call.1} parent=5 // pred_check
        _
      $region10: #{tpu_custom_call.1} parent=5 // pred_check_branch
        %263 = sbr.rel (%p260) target = $region12
      $region11: #{tpu_custom_call.1} parent=5 // pred_region
        %s264 = ssub.s32 %s31, 1
        // Predicated region
        $region13: #{tpu_custom_call.1} parent=11 // pred_check
          %p265 = pneg %p156
        $region14: #{tpu_custom_call.1} parent=11 // pred_check_branch
          %267 = sbr.rel (%p265) target = $region16
        $region15: #{tpu_custom_call.1} parent=11 // pred_region
          _
        $region16: #{tpu_custom_call.1} parent=11 // pred_fallthru
          _
        // Predicated region
        $region17: #{tpu_custom_call.1} parent=11 // pred_check
          %p268 = pneg %p177
        $region18: #{tpu_custom_call.1} parent=11 // pred_check_branch
          %270 = sbr.rel (%p268) target = $region20
        $region19: #{tpu_custom_call.1} parent=11 // pred_region
          _
        $region20: #{tpu_custom_call.1} parent=11 // pred_fallthru
          _
        // Predicated region
        $region21: #{tpu_custom_call.1} parent=11 // pred_check
          %p271 = pneg %p198
        $region22: #{tpu_custom_call.1} parent=11 // pred_check_branch
          %273 = sbr.rel (%p271) target = $region24
        $region23: #{tpu_custom_call.1} parent=11 // pred_region
          _
        $region24: #{tpu_custom_call.1} parent=11 // pred_fallthru
          _
      $region12: #{tpu_custom_call.1} parent=5 // pred_fallthru
        _
      %p274 = scmp.lt.s32.totalorder %s31, 2
      // Predicated region
      $region25: #{tpu_custom_call.1} parent=5 // pred_check
        %p275 = pneg %p274
      $region26: #{tpu_custom_call.1} parent=5 // pred_check_branch
        %277 = sbr.rel (%p275) target = $region28
      $region27: #{tpu_custom_call.1} parent=5 // pred_region
        // Predicated region
        $region29: #{tpu_custom_call.1} parent=27 // pred_check
          %p278 = pneg %p51
        $region30: #{tpu_custom_call.1} parent=27 // pred_check_branch
          %280 = sbr.rel (%p278) target = $region32
        $region31: #{tpu_custom_call.1} parent=27 // pred_region
          %s281 = sand.u32 %s41, 1
          %s282 = scalar_lea.sflag [#allocation4], %s281
          %s283 = sand.u32 %s41, 1
          %s284 = smul.addr %s283, 128
          %s285 = scalar_lea.vmem [#allocation3], %s284
          %s286 = smul.u32 16, %s31
          %288 = vsyncadd %s282, 0
          %s289 = smul.addr %s286, 8
          %s290 = scalar_lea.hbm %s0, %s289
          %s291 = sshll.u32 %s290, 4
          %s292 = int_to_ptr.hbm [resolvable:$true] %s291
          %s293 = sshll.u32 %s285, 4
          %s294 = int_to_ptr.vmem [resolvable:$true] %s293
          %299 = dma.hbm_to_vmem [thread:$0]  %s292, 2048, %s294, %s282, 128, 128, 8
        $region32: #{tpu_custom_call.1} parent=27 // pred_fallthru
          _
        // Predicated region
        $region33: #{tpu_custom_call.1} parent=27 // pred_check
          %p300 = pneg %p77
        $region34: #{tpu_custom_call.1} parent=27 // pred_check_branch
          %302 = sbr.rel (%p300) target = $region36
        $region35: #{tpu_custom_call.1} parent=27 // pred_region
          %s303 = sand.u32 %s31, 1
          %s304 = scalar_lea.sflag [#allocation7], %s303
          %s305 = sand.u32 %s67, 1
          %s306 = smul.addr %s305, 128
          %s307 = scalar_lea.vmem [#allocation6], %s306
          %s308 = smul.u32 16, %s31
          %310 = vsyncadd %s304, 0
          %s311 = smul.addr %s308, 8
          %s312 = scalar_lea.hbm %s1, %s311
          %s313 = sshll.u32 %s312, 4
          %s314 = int_to_ptr.hbm [resolvable:$true] %s313
          %s315 = sshll.u32 %s307, 4
          %s316 = int_to_ptr.vmem [resolvable:$true] %s315
          %321 = dma.hbm_to_vmem [thread:$0]  %s314, 2048, %s316, %s304, 128, 128, 8
        $region36: #{tpu_custom_call.1} parent=27 // pred_fallthru
          _
        // Predicated region
        $region37: #{tpu_custom_call.1} parent=27 // pred_check
          %p322 = pneg %p103
        $region38: #{tpu_custom_call.1} parent=27 // pred_check_branch
          %324 = sbr.rel (%p322) target = $region40
        $region39: #{tpu_custom_call.1} parent=27 // pred_region
          %s325 = sand.u32 %s31, 1
          %s326 = scalar_lea.sflag [#allocation7], %s325
          %s327 = sand.u32 %s93, 1
          %s328 = smul.addr %s327, 128
          %s329 = scalar_lea.vmem [#allocation8], %s328
          %s330 = smul.u32 16, %s31
          %332 = vsyncadd %s326, 0
          %s333 = smul.addr %s330, 8
          %s334 = scalar_lea.hbm %s2, %s333
          %s335 = sshll.u32 %s334, 4
          %s336 = int_to_ptr.hbm [resolvable:$true] %s335
          %s337 = sshll.u32 %s329, 4
          %s338 = int_to_ptr.vmem [resolvable:$true] %s337
          %343 = dma.hbm_to_vmem [thread:$0]  %s336, 2048, %s338, %s326, 128, 128, 8
        $region40: #{tpu_custom_call.1} parent=27 // pred_fallthru
          _
        // Predicated region
        $region41: #{tpu_custom_call.1} parent=27 // pred_check
          %p344 = pneg %p129
        $region42: #{tpu_custom_call.1} parent=27 // pred_check_branch
          %346 = sbr.rel (%p344) target = $region44
        $region43: #{tpu_custom_call.1} parent=27 // pred_region
          %s347 = sand.u32 %s119, 1
          %s348 = scalar_lea.sflag [#allocation10], %s347
          %s349 = sand.u32 %s119, 1
          %s350 = smul.addr %s349, 128
          %s351 = scalar_lea.vmem [#allocation9], %s350
          %s352 = smul.u32 16, %s31
          %354 = vsyncadd %s348, 0
          %s355 = smul.addr %s352, 8
          %s356 = scalar_lea.hbm %s3, %s355
          %s357 = sshll.u32 %s356, 4
          %s358 = int_to_ptr.hbm [resolvable:$true] %s357
          %s359 = sshll.u32 %s351, 4
          %s360 = int_to_ptr.vmem [resolvable:$true] %s359
          %365 = dma.hbm_to_vmem [thread:$0]  %s358, 2048, %s360, %s348, 128, 128, 8
        $region44: #{tpu_custom_call.1} parent=27 // pred_fallthru
          _
      $region28: #{tpu_custom_call.1} parent=5 // pred_fallthru
        _
      %p366 = scmp.le.s32.totalorder 1, %s31
      %p367 = scmp.lt.s32.totalorder %s31, 3
      %p368 = pnand %p366, %p367
      %p369 = pneg %p368
      // Predicated region
      $region45: #{tpu_custom_call.1} parent=5 // pred_check
        _
      $region46: #{tpu_custom_call.1} parent=5 // pred_check_branch
        %371 = sbr.rel (%p368) target = $region48
      $region47: #{tpu_custom_call.1} parent=5 // pred_region
        %s372 = ssub.s32 %s31, 1
        %s373 = sand.u32 %s44, 1
        %s374 = scalar_lea.sflag [#allocation4], %s373
        %s375 = sand.u32 %s44, 1
        %s376 = smul.addr %s375, 128
        %s377 = scalar_lea.vmem [#allocation3], %s376
        // Predicated region
        $region49: #{tpu_custom_call.1} parent=47 // pred_check
          %p378 = pneg %p57
        $region50: #{tpu_custom_call.1} parent=47 // pred_check_branch
          %380 = sbr.rel (%p378) target = $region52
        $region51: #{tpu_custom_call.1} parent=47 // pred_region
          %382 = dma.done %s374, 2048
        $region52: #{tpu_custom_call.1} parent=47 // pred_fallthru
          _
        %s383 = sand.u32 %s36, 1
        %s384 = scalar_lea.sflag [#allocation7], %s383
        %s385 = sand.u32 %s70, 1
        %s386 = smul.addr %s385, 128
        %s387 = scalar_lea.vmem [#allocation6], %s386
        // Predicated region
        $region53: #{tpu_custom_call.1} parent=47 // pred_check
          %p388 = pneg %p83
        $region54: #{tpu_custom_call.1} parent=47 // pred_check_branch
          %390 = sbr.rel (%p388) target = $region56
        $region55: #{tpu_custom_call.1} parent=47 // pred_region
          %392 = dma.done %s384, 2048
        $region56: #{tpu_custom_call.1} parent=47 // pred_fallthru
          _
        %s393 = sand.u32 %s36, 1
        %s394 = scalar_lea.sflag [#allocation7], %s393
        %s395 = sand.u32 %s96, 1
        %s396 = smul.addr %s395, 128
        %s397 = scalar_lea.vmem [#allocation8], %s396
        // Predicated region
        $region57: #{tpu_custom_call.1} parent=47 // pred_check
          %p398 = pneg %p109
        $region58: #{tpu_custom_call.1} parent=47 // pred_check_branch
          %400 = sbr.rel (%p398) target = $region60
        $region59: #{tpu_custom_call.1} parent=47 // pred_region
          %402 = dma.done %s394, 2048
        $region60: #{tpu_custom_call.1} parent=47 // pred_fallthru
          _
        %s403 = sand.u32 %s122, 1
        %s404 = scalar_lea.sflag [#allocation10], %s403
        %s405 = sand.u32 %s122, 1
        %s406 = smul.addr %s405, 128
        %s407 = scalar_lea.vmem [#allocation9], %s406
        // Predicated region
        $region61: #{tpu_custom_call.1} parent=47 // pred_check
          %p408 = pneg %p135
        $region62: #{tpu_custom_call.1} parent=47 // pred_check_branch
          %410 = sbr.rel (%p408) target = $region64
        $region63: #{tpu_custom_call.1} parent=47 // pred_region
          %412 = dma.done %s404, 2048
        $region64: #{tpu_custom_call.1} parent=47 // pred_fallthru
          _
        %s413 = sand.u32 %s44, 1
        %s414 = scalar_lea.sflag [#allocation4], %s413
        %s415 = sand.u32 %s44, 1
        %s416 = smul.addr %s415, 128
        %s417 = scalar_lea.vmem [#allocation3], %s416
        %p418 = pneg %p57
        %p419 = pneg %p54
        %s420 = sand.u32 %s36, 1
        %s421 = scalar_lea.sflag [#allocation7], %s420
        %s422 = sand.u32 %s70, 1
        %s423 = smul.addr %s422, 128
        %s424 = scalar_lea.vmem [#allocation6], %s423
        %p425 = pneg %p83
        %p426 = pneg %p80
        %s427 = sand.u32 %s36, 1
        %s428 = scalar_lea.sflag [#allocation7], %s427
        %s429 = sand.u32 %s96, 1
        %s430 = smul.addr %s429, 128
        %s431 = scalar_lea.vmem [#allocation8], %s430
        %p432 = pneg %p109
        %p433 = pneg %p106
        %s434 = sand.u32 %s122, 1
        %s435 = scalar_lea.sflag [#allocation10], %s434
        %s436 = sand.u32 %s122, 1
        %s437 = smul.addr %s436, 128
        %s438 = scalar_lea.vmem [#allocation9], %s437
        %p439 = pneg %p135
        %p440 = pneg %p132
        %p441 = pneg %p156
        %p442 = pneg %p153
        %p443 = pneg %p177
        %p444 = pneg %p174
        %p445 = pneg %p198
        %p446 = pneg %p195
        %p447 = pneg %p224
        %p448 = pneg %p221
        %s449 = sand.u32 %s211, 1
        %s450 = scalar_lea.sflag [#allocation5], %s449
        %s451 = sand.u32 %s211, 1
        %s452 = smul.addr %s451, 128
        %s453 = scalar_lea.vmem [#allocation11], %s452
        %p454 = pneg %p250
        %p455 = pneg %p247
        %s456 = sand.u32 %s237, 1
        %s457 = scalar_lea.sflag [#allocation13], %s456
        %s458 = sand.u32 %s237, 1
        %s459 = smul.addr %s458, 4
        %s460 = scalar_lea.vmem [#allocation12], %s459
        %s461 = smul.u32 16, %s36
        %s462 = smul.u32 16, %s36
        %s463 = smul.u32 16, %s36
        %s464 = smul.u32 16, %s36
        %s465 = smul.u32 16, %s36
        %v466 = vld [vmem:[%s4] sm:$0x1]
        %v467 = vld [vmem:[%s5] sm:$0x1]
        %s468 = sld [smem:[#allocation2]]
        %v469 = vld [vmem:[%s377] sm:$0xff]
        %v470 = vld [vmem:[%s377 + $0x8] sm:$0xff]
        %v471 = vld [vmem:[%s377 + $0x10] sm:$0xff]
        %v472 = vld [vmem:[%s377 + $0x18] sm:$0xff]
        %v473 = vld [vmem:[%s377 + $0x20] sm:$0xff]
        %v474 = vld [vmem:[%s377 + $0x28] sm:$0xff]
        %v475 = vld [vmem:[%s377 + $0x30] sm:$0xff]
        %v476 = vld [vmem:[%s377 + $0x38] sm:$0xff]
        %v477 = vld [vmem:[%s377 + $0x40] sm:$0xff]
        %v478 = vld [vmem:[%s377 + $0x48] sm:$0xff]
        %v479 = vld [vmem:[%s377 + $0x50] sm:$0xff]
        %v480 = vld [vmem:[%s377 + $0x58] sm:$0xff]
        %v481 = vld [vmem:[%s377 + $0x60] sm:$0xff]
        %v482 = vld [vmem:[%s377 + $0x68] sm:$0xff]
        %v483 = vld [vmem:[%s377 + $0x70] sm:$0xff]
        %v484 = vld [vmem:[%s377 + $0x78] sm:$0xff]
        %v485 = vmul.f32 %v469, %v469
        %v486 = vmul.f32 %v470, %v470
        %v487 = vmul.f32 %v471, %v471
        %v488 = vmul.f32 %v472, %v472
        %v489 = vmul.f32 %v473, %v473
        %v490 = vmul.f32 %v474, %v474
        %v491 = vmul.f32 %v475, %v475
        %v492 = vmul.f32 %v476, %v476
        %v493 = vmul.f32 %v477, %v477
        %v494 = vmul.f32 %v478, %v478
        %v495 = vmul.f32 %v479, %v479
        %v496 = vmul.f32 %v480, %v480
        %v497 = vmul.f32 %v481, %v481
        %v498 = vmul.f32 %v482, %v482
        %v499 = vmul.f32 %v483, %v483
        %v500 = vmul.f32 %v484, %v484
        %501 = vadd.xlane.f32.xlu0 %v485
        %v502 = vpop.xlane.xlu0 %501
        %503 = vadd.xlane.f32.xlu0 %v486
        %v504 = vpop.xlane.xlu0 %503
        %505 = vadd.xlane.f32.xlu0 %v487
        %v506 = vpop.xlane.xlu0 %505
        %507 = vadd.xlane.f32.xlu0 %v488
        %v508 = vpop.xlane.xlu0 %507
        %509 = vadd.xlane.f32.xlu0 %v489
        %v510 = vpop.xlane.xlu0 %509
        %511 = vadd.xlane.f32.xlu0 %v490
        %v512 = vpop.xlane.xlu0 %511
        %513 = vadd.xlane.f32.xlu0 %v491
        %v514 = vpop.xlane.xlu0 %513
        %515 = vadd.xlane.f32.xlu0 %v492
        %v516 = vpop.xlane.xlu0 %515
        %517 = vadd.xlane.f32.xlu0 %v493
        %v518 = vpop.xlane.xlu0 %517
        %519 = vadd.xlane.f32.xlu0 %v494
        %v520 = vpop.xlane.xlu0 %519
        %521 = vadd.xlane.f32.xlu0 %v495
        %v522 = vpop.xlane.xlu0 %521
        %523 = vadd.xlane.f32.xlu0 %v496
        %v524 = vpop.xlane.xlu0 %523
        %525 = vadd.xlane.f32.xlu0 %v497
        %v526 = vpop.xlane.xlu0 %525
        %527 = vadd.xlane.f32.xlu0 %v498
        %v528 = vpop.xlane.xlu0 %527
        %529 = vadd.xlane.f32.xlu0 %v499
        %v530 = vpop.xlane.xlu0 %529
        %531 = vadd.xlane.f32.xlu0 %v500
        %v532 = vpop.xlane.xlu0 %531
        %v533 = vmax.f32 %v502, 1e-24
        %v534 = vmax.f32 %v504, 1e-24
        %v535 = vmax.f32 %v506, 1e-24
        %v536 = vmax.f32 %v508, 1e-24
        %v537 = vmax.f32 %v510, 1e-24
        %v538 = vmax.f32 %v512, 1e-24
        %v539 = vmax.f32 %v514, 1e-24
        %v540 = vmax.f32 %v516, 1e-24
        %v541 = vmax.f32 %v518, 1e-24
        %v542 = vmax.f32 %v520, 1e-24
        %v543 = vmax.f32 %v522, 1e-24
        %v544 = vmax.f32 %v524, 1e-24
        %v545 = vmax.f32 %v526, 1e-24
        %v546 = vmax.f32 %v528, 1e-24
        %v547 = vmax.f32 %v530, 1e-24
        %v548 = vmax.f32 %v532, 1e-24
        %v549 = vrsqrt.pop %v533
        %v550 = vmul.f32 %v549, %v533
        %v551 = vmul.f32 %v550, %v549
        %v552 = vmul.f32 0.5, %v551
        %v553 = vsub.f32 1.5, %v552
        %v554 = vmul.f32 %v549, %v553
        %vm555 = vweird.f32 %v533
        %vm556 = vweird.f32 %v549
        %vm557 = vmor %vm555, %vm556
        %v558 = vsel %vm557, %v549, %v554
        %v559 = vrsqrt.pop %v534
        %v560 = vmul.f32 %v559, %v534
        %v561 = vmul.f32 %v560, %v559
        %v562 = vmul.f32 0.5, %v561
        %v563 = vsub.f32 1.5, %v562
        %v564 = vmul.f32 %v559, %v563
        %vm565 = vweird.f32 %v534
        %vm566 = vweird.f32 %v559
        %vm567 = vmor %vm565, %vm566
        %v568 = vsel %vm567, %v559, %v564
        %v569 = vrsqrt.pop %v535
        %v570 = vmul.f32 %v569, %v535
        %v571 = vmul.f32 %v570, %v569
        %v572 = vmul.f32 0.5, %v571
        %v573 = vsub.f32 1.5, %v572
        %v574 = vmul.f32 %v569, %v573
        %vm575 = vweird.f32 %v535
        %vm576 = vweird.f32 %v569
        %vm577 = vmor %vm575, %vm576
        %v578 = vsel %vm577, %v569, %v574
        %v579 = vrsqrt.pop %v536
        %v580 = vmul.f32 %v579, %v536
        %v581 = vmul.f32 %v580, %v579
        %v582 = vmul.f32 0.5, %v581
        %v583 = vsub.f32 1.5, %v582
        %v584 = vmul.f32 %v579, %v583
        %vm585 = vweird.f32 %v536
        %vm586 = vweird.f32 %v579
        %vm587 = vmor %vm585, %vm586
        %v588 = vsel %vm587, %v579, %v584
        %v589 = vrsqrt.pop %v537
        %v590 = vmul.f32 %v589, %v537
        %v591 = vmul.f32 %v590, %v589
        %v592 = vmul.f32 0.5, %v591
        %v593 = vsub.f32 1.5, %v592
        %v594 = vmul.f32 %v589, %v593
        %vm595 = vweird.f32 %v537
        %vm596 = vweird.f32 %v589
        %vm597 = vmor %vm595, %vm596
        %v598 = vsel %vm597, %v589, %v594
        %v599 = vrsqrt.pop %v538
        %v600 = vmul.f32 %v599, %v538
        %v601 = vmul.f32 %v600, %v599
        %v602 = vmul.f32 0.5, %v601
        %v603 = vsub.f32 1.5, %v602
        %v604 = vmul.f32 %v599, %v603
        %vm605 = vweird.f32 %v538
        %vm606 = vweird.f32 %v599
        %vm607 = vmor %vm605, %vm606
        %v608 = vsel %vm607, %v599, %v604
        %v609 = vrsqrt.pop %v539
        %v610 = vmul.f32 %v609, %v539
        %v611 = vmul.f32 %v610, %v609
        %v612 = vmul.f32 0.5, %v611
        %v613 = vsub.f32 1.5, %v612
        %v614 = vmul.f32 %v609, %v613
        %vm615 = vweird.f32 %v539
        %vm616 = vweird.f32 %v609
        %vm617 = vmor %vm615, %vm616
        %v618 = vsel %vm617, %v609, %v614
        %v619 = vrsqrt.pop %v540
        %v620 = vmul.f32 %v619, %v540
        %v621 = vmul.f32 %v620, %v619
        %v622 = vmul.f32 0.5, %v621
        %v623 = vsub.f32 1.5, %v622
        %v624 = vmul.f32 %v619, %v623
        %vm625 = vweird.f32 %v540
        %vm626 = vweird.f32 %v619
        %vm627 = vmor %vm625, %vm626
        %v628 = vsel %vm627, %v619, %v624
        %v629 = vrsqrt.pop %v541
        %v630 = vmul.f32 %v629, %v541
        %v631 = vmul.f32 %v630, %v629
        %v632 = vmul.f32 0.5, %v631
        %v633 = vsub.f32 1.5, %v632
        %v634 = vmul.f32 %v629, %v633
        %vm635 = vweird.f32 %v541
        %vm636 = vweird.f32 %v629
        %vm637 = vmor %vm635, %vm636
        %v638 = vsel %vm637, %v629, %v634
        %v639 = vrsqrt.pop %v542
        %v640 = vmul.f32 %v639, %v542
        %v641 = vmul.f32 %v640, %v639
        %v642 = vmul.f32 0.5, %v641
        %v643 = vsub.f32 1.5, %v642
        %v644 = vmul.f32 %v639, %v643
        %vm645 = vweird.f32 %v542
        %vm646 = vweird.f32 %v639
        %vm647 = vmor %vm645, %vm646
        %v648 = vsel %vm647, %v639, %v644
        %v649 = vrsqrt.pop %v543
        %v650 = vmul.f32 %v649, %v543
        %v651 = vmul.f32 %v650, %v649
        %v652 = vmul.f32 0.5, %v651
        %v653 = vsub.f32 1.5, %v652
        %v654 = vmul.f32 %v649, %v653
        %vm655 = vweird.f32 %v543
        %vm656 = vweird.f32 %v649
        %vm657 = vmor %vm655, %vm656
        %v658 = vsel %vm657, %v649, %v654
        %v659 = vrsqrt.pop %v544
        %v660 = vmul.f32 %v659, %v544
        %v661 = vmul.f32 %v660, %v659
        %v662 = vmul.f32 0.5, %v661
        %v663 = vsub.f32 1.5, %v662
        %v664 = vmul.f32 %v659, %v663
        %vm665 = vweird.f32 %v544
        %vm666 = vweird.f32 %v659
        %vm667 = vmor %vm665, %vm666
        %v668 = vsel %vm667, %v659, %v664
        %v669 = vrsqrt.pop %v545
        %v670 = vmul.f32 %v669, %v545
        %v671 = vmul.f32 %v670, %v669
        %v672 = vmul.f32 0.5, %v671
        %v673 = vsub.f32 1.5, %v672
        %v674 = vmul.f32 %v669, %v673
        %vm675 = vweird.f32 %v545
        %vm676 = vweird.f32 %v669
        %vm677 = vmor %vm675, %vm676
        %v678 = vsel %vm677, %v669, %v674
        %v679 = vrsqrt.pop %v546
        %v680 = vmul.f32 %v679, %v546
        %v681 = vmul.f32 %v680, %v679
        %v682 = vmul.f32 0.5, %v681
        %v683 = vsub.f32 1.5, %v682
        %v684 = vmul.f32 %v679, %v683
        %vm685 = vweird.f32 %v546
        %vm686 = vweird.f32 %v679
        %vm687 = vmor %vm685, %vm686
        %v688 = vsel %vm687, %v679, %v684
        %v689 = vrsqrt.pop %v547
        %v690 = vmul.f32 %v689, %v547
        %v691 = vmul.f32 %v690, %v689
        %v692 = vmul.f32 0.5, %v691
        %v693 = vsub.f32 1.5, %v692
        %v694 = vmul.f32 %v689, %v693
        %vm695 = vweird.f32 %v547
        %vm696 = vweird.f32 %v689
        %vm697 = vmor %vm695, %vm696
        %v698 = vsel %vm697, %v689, %v694
        %v699 = vrsqrt.pop %v548
        %v700 = vmul.f32 %v699, %v548
        %v701 = vmul.f32 %v700, %v699
        %v702 = vmul.f32 0.5, %v701
        %v703 = vsub.f32 1.5, %v702
        %v704 = vmul.f32 %v699, %v703
        %vm705 = vweird.f32 %v548
        %vm706 = vweird.f32 %v699
        %vm707 = vmor %vm705, %vm706
        %v708 = vsel %vm707, %v699, %v704
        %v709 = vmul.f32 %v469, %v558
        %v710 = vmul.f32 %v470, %v568
        %v711 = vmul.f32 %v471, %v578
        %v712 = vmul.f32 %v472, %v588
        %v713 = vmul.f32 %v473, %v598
        %v714 = vmul.f32 %v474, %v608
        %v715 = vmul.f32 %v475, %v618
        %v716 = vmul.f32 %v476, %v628
        %v717 = vmul.f32 %v477, %v638
        %v718 = vmul.f32 %v478, %v648
        %v719 = vmul.f32 %v479, %v658
        %v720 = vmul.f32 %v480, %v668
        %v721 = vmul.f32 %v481, %v678
        %v722 = vmul.f32 %v482, %v688
        %v723 = vmul.f32 %v483, %v698
        %v724 = vmul.f32 %v484, %v708
        %v726 = vperm.slane %v467, 0
        %v728 = vmul.f32 %v709, %v726
        %v729 = vmul.f32 %v710, %v726
        %v730 = vmul.f32 %v711, %v726
        %v731 = vmul.f32 %v712, %v726
        %v732 = vmul.f32 %v713, %v726
        %v733 = vmul.f32 %v714, %v726
        %v734 = vmul.f32 %v715, %v726
        %v735 = vmul.f32 %v716, %v726
        %v736 = vmul.f32 %v717, %v726
        %v737 = vmul.f32 %v718, %v726
        %v738 = vmul.f32 %v719, %v726
        %v739 = vmul.f32 %v720, %v726
        %v740 = vmul.f32 %v721, %v726
        %v741 = vmul.f32 %v722, %v726
        %v742 = vmul.f32 %v723, %v726
        %v743 = vmul.f32 %v724, %v726
        %744 = vadd.xlane.f32.xlu0 %v728
        %v745 = vpop.xlane.xlu0 %744
        %746 = vadd.xlane.f32.xlu0 %v729
        %v747 = vpop.xlane.xlu0 %746
        %748 = vadd.xlane.f32.xlu0 %v730
        %v749 = vpop.xlane.xlu0 %748
        %750 = vadd.xlane.f32.xlu0 %v731
        %v751 = vpop.xlane.xlu0 %750
        %752 = vadd.xlane.f32.xlu0 %v732
        %v753 = vpop.xlane.xlu0 %752
        %754 = vadd.xlane.f32.xlu0 %v733
        %v755 = vpop.xlane.xlu0 %754
        %756 = vadd.xlane.f32.xlu0 %v734
        %v757 = vpop.xlane.xlu0 %756
        %758 = vadd.xlane.f32.xlu0 %v735
        %v759 = vpop.xlane.xlu0 %758
        %760 = vadd.xlane.f32.xlu0 %v736
        %v761 = vpop.xlane.xlu0 %760
        %762 = vadd.xlane.f32.xlu0 %v737
        %v763 = vpop.xlane.xlu0 %762
        %764 = vadd.xlane.f32.xlu0 %v738
        %v765 = vpop.xlane.xlu0 %764
        %766 = vadd.xlane.f32.xlu0 %v739
        %v767 = vpop.xlane.xlu0 %766
        %768 = vadd.xlane.f32.xlu0 %v740
        %v769 = vpop.xlane.xlu0 %768
        %770 = vadd.xlane.f32.xlu0 %v741
        %v771 = vpop.xlane.xlu0 %770
        %772 = vadd.xlane.f32.xlu0 %v742
        %v773 = vpop.xlane.xlu0 %772
        %774 = vadd.xlane.f32.xlu0 %v743
        %v775 = vpop.xlane.xlu0 %774
        %v776 = vstv %s468
        %v777 = vadd.f32 %v745, %v776
        %v778 = vadd.f32 %v747, %v776
        %v779 = vadd.f32 %v749, %v776
        %v780 = vadd.f32 %v751, %v776
        %v781 = vadd.f32 %v753, %v776
        %v782 = vadd.f32 %v755, %v776
        %v783 = vadd.f32 %v757, %v776
        %v784 = vadd.f32 %v759, %v776
        %v785 = vadd.f32 %v761, %v776
        %v786 = vadd.f32 %v763, %v776
        %v787 = vadd.f32 %v765, %v776
        %v788 = vadd.f32 %v767, %v776
        %v789 = vadd.f32 %v769, %v776
        %v790 = vadd.f32 %v771, %v776
        %v791 = vadd.f32 %v773, %v776
        %v792 = vadd.f32 %v775, %v776
        %v793 = vld [vmem:[%s387] sm:$0xff]
        %v794 = vld [vmem:[%s387 + $0x8] sm:$0xff]
        %v795 = vld [vmem:[%s387 + $0x10] sm:$0xff]
        %v796 = vld [vmem:[%s387 + $0x18] sm:$0xff]
        %v797 = vld [vmem:[%s387 + $0x20] sm:$0xff]
        %v798 = vld [vmem:[%s387 + $0x28] sm:$0xff]
        %v799 = vld [vmem:[%s387 + $0x30] sm:$0xff]
        %v800 = vld [vmem:[%s387 + $0x38] sm:$0xff]
        %v801 = vld [vmem:[%s387 + $0x40] sm:$0xff]
        %v802 = vld [vmem:[%s387 + $0x48] sm:$0xff]
        %v803 = vld [vmem:[%s387 + $0x50] sm:$0xff]
        %v804 = vld [vmem:[%s387 + $0x58] sm:$0xff]
        %v805 = vld [vmem:[%s387 + $0x60] sm:$0xff]
        %v806 = vld [vmem:[%s387 + $0x68] sm:$0xff]
        %v807 = vld [vmem:[%s387 + $0x70] sm:$0xff]
        %v808 = vld [vmem:[%s387 + $0x78] sm:$0xff]
        %v809 = vmul.f32 %v793, %v793
        %v810 = vmul.f32 %v794, %v794
        %v811 = vmul.f32 %v795, %v795
        %v812 = vmul.f32 %v796, %v796
        %v813 = vmul.f32 %v797, %v797
        %v814 = vmul.f32 %v798, %v798
        %v815 = vmul.f32 %v799, %v799
        %v816 = vmul.f32 %v800, %v800
        %v817 = vmul.f32 %v801, %v801
        %v818 = vmul.f32 %v802, %v802
        %v819 = vmul.f32 %v803, %v803
        %v820 = vmul.f32 %v804, %v804
        %v821 = vmul.f32 %v805, %v805
        %v822 = vmul.f32 %v806, %v806
        %v823 = vmul.f32 %v807, %v807
        %v824 = vmul.f32 %v808, %v808
        %825 = vadd.xlane.f32.xlu0 %v809
        %v826 = vpop.xlane.xlu0 %825
        %827 = vadd.xlane.f32.xlu0 %v810
        %v828 = vpop.xlane.xlu0 %827
        %829 = vadd.xlane.f32.xlu0 %v811
        %v830 = vpop.xlane.xlu0 %829
        %831 = vadd.xlane.f32.xlu0 %v812
        %v832 = vpop.xlane.xlu0 %831
        %833 = vadd.xlane.f32.xlu0 %v813
        %v834 = vpop.xlane.xlu0 %833
        %835 = vadd.xlane.f32.xlu0 %v814
        %v836 = vpop.xlane.xlu0 %835
        %837 = vadd.xlane.f32.xlu0 %v815
        %v838 = vpop.xlane.xlu0 %837
        %839 = vadd.xlane.f32.xlu0 %v816
        %v840 = vpop.xlane.xlu0 %839
        %841 = vadd.xlane.f32.xlu0 %v817
        %v842 = vpop.xlane.xlu0 %841
        %843 = vadd.xlane.f32.xlu0 %v818
        %v844 = vpop.xlane.xlu0 %843
        %845 = vadd.xlane.f32.xlu0 %v819
        %v846 = vpop.xlane.xlu0 %845
        %847 = vadd.xlane.f32.xlu0 %v820
        %v848 = vpop.xlane.xlu0 %847
        %849 = vadd.xlane.f32.xlu0 %v821
        %v850 = vpop.xlane.xlu0 %849
        %851 = vadd.xlane.f32.xlu0 %v822
        %v852 = vpop.xlane.xlu0 %851
        %853 = vadd.xlane.f32.xlu0 %v823
        %v854 = vpop.xlane.xlu0 %853
        %855 = vadd.xlane.f32.xlu0 %v824
        %v856 = vpop.xlane.xlu0 %855
        %v857 = vmax.f32 %v826, 1e-24
        %v858 = vmax.f32 %v828, 1e-24
        %v859 = vmax.f32 %v830, 1e-24
        %v860 = vmax.f32 %v832, 1e-24
        %v861 = vmax.f32 %v834, 1e-24
        %v862 = vmax.f32 %v836, 1e-24
        %v863 = vmax.f32 %v838, 1e-24
        %v864 = vmax.f32 %v840, 1e-24
        %v865 = vmax.f32 %v842, 1e-24
        %v866 = vmax.f32 %v844, 1e-24
        %v867 = vmax.f32 %v846, 1e-24
        %v868 = vmax.f32 %v848, 1e-24
        %v869 = vmax.f32 %v850, 1e-24
        %v870 = vmax.f32 %v852, 1e-24
        %v871 = vmax.f32 %v854, 1e-24
        %v872 = vmax.f32 %v856, 1e-24
        %v873 = vrsqrt.pop %v857
        %v874 = vmul.f32 %v873, %v857
        %v875 = vmul.f32 %v874, %v873
        %v876 = vmul.f32 0.5, %v875
        %v877 = vsub.f32 1.5, %v876
        %v878 = vmul.f32 %v873, %v877
        %vm879 = vweird.f32 %v857
        %vm880 = vweird.f32 %v873
        %vm881 = vmor %vm879, %vm880
        %v882 = vsel %vm881, %v873, %v878
        %v883 = vrsqrt.pop %v858
        %v884 = vmul.f32 %v883, %v858
        %v885 = vmul.f32 %v884, %v883
        %v886 = vmul.f32 0.5, %v885
        %v887 = vsub.f32 1.5, %v886
        %v888 = vmul.f32 %v883, %v887
        %vm889 = vweird.f32 %v858
        %vm890 = vweird.f32 %v883
        %vm891 = vmor %vm889, %vm890
        %v892 = vsel %vm891, %v883, %v888
        %v893 = vrsqrt.pop %v859
        %v894 = vmul.f32 %v893, %v859
        %v895 = vmul.f32 %v894, %v893
        %v896 = vmul.f32 0.5, %v895
        %v897 = vsub.f32 1.5, %v896
        %v898 = vmul.f32 %v893, %v897
        %vm899 = vweird.f32 %v859
        %vm900 = vweird.f32 %v893
        %vm901 = vmor %vm899, %vm900
        %v902 = vsel %vm901, %v893, %v898
        %v903 = vrsqrt.pop %v860
        %v904 = vmul.f32 %v903, %v860
        %v905 = vmul.f32 %v904, %v903
        %v906 = vmul.f32 0.5, %v905
        %v907 = vsub.f32 1.5, %v906
        %v908 = vmul.f32 %v903, %v907
        %vm909 = vweird.f32 %v860
        %vm910 = vweird.f32 %v903
        %vm911 = vmor %vm909, %vm910
        %v912 = vsel %vm911, %v903, %v908
        %v913 = vrsqrt.pop %v861
        %v914 = vmul.f32 %v913, %v861
        %v915 = vmul.f32 %v914, %v913
        %v916 = vmul.f32 0.5, %v915
        %v917 = vsub.f32 1.5, %v916
        %v918 = vmul.f32 %v913, %v917
        %vm919 = vweird.f32 %v861
        %vm920 = vweird.f32 %v913
        %vm921 = vmor %vm919, %vm920
        %v922 = vsel %vm921, %v913, %v918
        %v923 = vrsqrt.pop %v862
        %v924 = vmul.f32 %v923, %v862
        %v925 = vmul.f32 %v924, %v923
        %v926 = vmul.f32 0.5, %v925
        %v927 = vsub.f32 1.5, %v926
        %v928 = vmul.f32 %v923, %v927
        %vm929 = vweird.f32 %v862
        %vm930 = vweird.f32 %v923
        %vm931 = vmor %vm929, %vm930
        %v932 = vsel %vm931, %v923, %v928
        %v933 = vrsqrt.pop %v863
        %v934 = vmul.f32 %v933, %v863
        %v935 = vmul.f32 %v934, %v933
        %v936 = vmul.f32 0.5, %v935
        %v937 = vsub.f32 1.5, %v936
        %v938 = vmul.f32 %v933, %v937
        %vm939 = vweird.f32 %v863
        %vm940 = vweird.f32 %v933
        %vm941 = vmor %vm939, %vm940
        %v942 = vsel %vm941, %v933, %v938
        %v943 = vrsqrt.pop %v864
        %v944 = vmul.f32 %v943, %v864
        %v945 = vmul.f32 %v944, %v943
        %v946 = vmul.f32 0.5, %v945
        %v947 = vsub.f32 1.5, %v946
        %v948 = vmul.f32 %v943, %v947
        %vm949 = vweird.f32 %v864
        %vm950 = vweird.f32 %v943
        %vm951 = vmor %vm949, %vm950
        %v952 = vsel %vm951, %v943, %v948
        %v953 = vrsqrt.pop %v865
        %v954 = vmul.f32 %v953, %v865
        %v955 = vmul.f32 %v954, %v953
        %v956 = vmul.f32 0.5, %v955
        %v957 = vsub.f32 1.5, %v956
        %v958 = vmul.f32 %v953, %v957
        %vm959 = vweird.f32 %v865
        %vm960 = vweird.f32 %v953
        %vm961 = vmor %vm959, %vm960
        %v962 = vsel %vm961, %v953, %v958
        %v963 = vrsqrt.pop %v866
        %v964 = vmul.f32 %v963, %v866
        %v965 = vmul.f32 %v964, %v963
        %v966 = vmul.f32 0.5, %v965
        %v967 = vsub.f32 1.5, %v966
        %v968 = vmul.f32 %v963, %v967
        %vm969 = vweird.f32 %v866
        %vm970 = vweird.f32 %v963
        %vm971 = vmor %vm969, %vm970
        %v972 = vsel %vm971, %v963, %v968
        %v973 = vrsqrt.pop %v867
        %v974 = vmul.f32 %v973, %v867
        %v975 = vmul.f32 %v974, %v973
        %v976 = vmul.f32 0.5, %v975
        %v977 = vsub.f32 1.5, %v976
        %v978 = vmul.f32 %v973, %v977
        %vm979 = vweird.f32 %v867
        %vm980 = vweird.f32 %v973
        %vm981 = vmor %vm979, %vm980
        %v982 = vsel %vm981, %v973, %v978
        %v983 = vrsqrt.pop %v868
        %v984 = vmul.f32 %v983, %v868
        %v985 = vmul.f32 %v984, %v983
        %v986 = vmul.f32 0.5, %v985
        %v987 = vsub.f32 1.5, %v986
        %v988 = vmul.f32 %v983, %v987
        %vm989 = vweird.f32 %v868
        %vm990 = vweird.f32 %v983
        %vm991 = vmor %vm989, %vm990
        %v992 = vsel %vm991, %v983, %v988
        %v993 = vrsqrt.pop %v869
        %v994 = vmul.f32 %v993, %v869
        %v995 = vmul.f32 %v994, %v993
        %v996 = vmul.f32 0.5, %v995
        %v997 = vsub.f32 1.5, %v996
        %v998 = vmul.f32 %v993, %v997
        %vm999 = vweird.f32 %v869
        %vm1000 = vweird.f32 %v993
        %vm1001 = vmor %vm999, %vm1000
        %v1002 = vsel %vm1001, %v993, %v998
        %v1003 = vrsqrt.pop %v870
        %v1004 = vmul.f32 %v1003, %v870
        %v1005 = vmul.f32 %v1004, %v1003
        %v1006 = vmul.f32 0.5, %v1005
        %v1007 = vsub.f32 1.5, %v1006
        %v1008 = vmul.f32 %v1003, %v1007
        %vm1009 = vweird.f32 %v870
        %vm1010 = vweird.f32 %v1003
        %vm1011 = vmor %vm1009, %vm1010
        %v1012 = vsel %vm1011, %v1003, %v1008
        %v1013 = vrsqrt.pop %v871
        %v1014 = vmul.f32 %v1013, %v871
        %v1015 = vmul.f32 %v1014, %v1013
        %v1016 = vmul.f32 0.5, %v1015
        %v1017 = vsub.f32 1.5, %v1016
        %v1018 = vmul.f32 %v1013, %v1017
        %vm1019 = vweird.f32 %v871
        %vm1020 = vweird.f32 %v1013
        %vm1021 = vmor %vm1019, %vm1020
        %v1022 = vsel %vm1021, %v1013, %v1018
        %v1023 = vrsqrt.pop %v872
        %v1024 = vmul.f32 %v1023, %v872
        %v1025 = vmul.f32 %v1024, %v1023
        %v1026 = vmul.f32 0.5, %v1025
        %v1027 = vsub.f32 1.5, %v1026
        %v1028 = vmul.f32 %v1023, %v1027
        %vm1029 = vweird.f32 %v872
        %vm1030 = vweird.f32 %v1023
        %vm1031 = vmor %vm1029, %vm1030
        %v1032 = vsel %vm1031, %v1023, %v1028
        %v1034 = vperm.slane %v466, 0
        %v1036 = vmul.f32 %v793, %v1034
        %v1037 = vmul.f32 %v794, %v1034
        %v1038 = vmul.f32 %v795, %v1034
        %v1039 = vmul.f32 %v796, %v1034
        %v1040 = vmul.f32 %v797, %v1034
        %v1041 = vmul.f32 %v798, %v1034
        %v1042 = vmul.f32 %v799, %v1034
        %v1043 = vmul.f32 %v800, %v1034
        %v1044 = vmul.f32 %v801, %v1034
        %v1045 = vmul.f32 %v802, %v1034
        %v1046 = vmul.f32 %v803, %v1034
        %v1047 = vmul.f32 %v804, %v1034
        %v1048 = vmul.f32 %v805, %v1034
        %v1049 = vmul.f32 %v806, %v1034
        %v1050 = vmul.f32 %v807, %v1034
        %v1051 = vmul.f32 %v808, %v1034
        %1052 = vadd.xlane.f32.xlu0 %v1036
        %v1053 = vpop.xlane.xlu0 %1052
        %1054 = vadd.xlane.f32.xlu0 %v1037
        %v1055 = vpop.xlane.xlu0 %1054
        %1056 = vadd.xlane.f32.xlu0 %v1038
        %v1057 = vpop.xlane.xlu0 %1056
        %1058 = vadd.xlane.f32.xlu0 %v1039
        %v1059 = vpop.xlane.xlu0 %1058
        %1060 = vadd.xlane.f32.xlu0 %v1040
        %v1061 = vpop.xlane.xlu0 %1060
        %1062 = vadd.xlane.f32.xlu0 %v1041
        %v1063 = vpop.xlane.xlu0 %1062
        %1064 = vadd.xlane.f32.xlu0 %v1042
        %v1065 = vpop.xlane.xlu0 %1064
        %1066 = vadd.xlane.f32.xlu0 %v1043
        %v1067 = vpop.xlane.xlu0 %1066
        %1068 = vadd.xlane.f32.xlu0 %v1044
        %v1069 = vpop.xlane.xlu0 %1068
        %1070 = vadd.xlane.f32.xlu0 %v1045
        %v1071 = vpop.xlane.xlu0 %1070
        %1072 = vadd.xlane.f32.xlu0 %v1046
        %v1073 = vpop.xlane.xlu0 %1072
        %1074 = vadd.xlane.f32.xlu0 %v1047
        %v1075 = vpop.xlane.xlu0 %1074
        %1076 = vadd.xlane.f32.xlu0 %v1048
        %v1077 = vpop.xlane.xlu0 %1076
        %1078 = vadd.xlane.f32.xlu0 %v1049
        %v1079 = vpop.xlane.xlu0 %1078
        %1080 = vadd.xlane.f32.xlu0 %v1050
        %v1081 = vpop.xlane.xlu0 %1080
        %1082 = vadd.xlane.f32.xlu0 %v1051
        %v1083 = vpop.xlane.xlu0 %1082
        %v1084 = vmul.f32 %v1053, %v882
        %v1085 = vmul.f32 %v1055, %v892
        %v1086 = vmul.f32 %v1057, %v902
        %v1087 = vmul.f32 %v1059, %v912
        %v1088 = vmul.f32 %v1061, %v922
        %v1089 = vmul.f32 %v1063, %v932
        %v1090 = vmul.f32 %v1065, %v942
        %v1091 = vmul.f32 %v1067, %v952
        %v1092 = vmul.f32 %v1069, %v962
        %v1093 = vmul.f32 %v1071, %v972
        %v1094 = vmul.f32 %v1073, %v982
        %v1095 = vmul.f32 %v1075, %v992
        %v1096 = vmul.f32 %v1077, %v1002
        %v1097 = vmul.f32 %v1079, %v1012
        %v1098 = vmul.f32 %v1081, %v1022
        %v1099 = vmul.f32 %v1083, %v1032
        %v1100 = vadd.f32 %v1084, %v777
        %v1101 = vadd.f32 %v1085, %v778
        %v1102 = vadd.f32 %v1086, %v779
        %v1103 = vadd.f32 %v1087, %v780
        %v1104 = vadd.f32 %v1088, %v781
        %v1105 = vadd.f32 %v1089, %v782
        %v1106 = vadd.f32 %v1090, %v783
        %v1107 = vadd.f32 %v1091, %v784
        %v1108 = vadd.f32 %v1092, %v785
        %v1109 = vadd.f32 %v1093, %v786
        %v1110 = vadd.f32 %v1094, %v787
        %v1111 = vadd.f32 %v1095, %v788
        %v1112 = vadd.f32 %v1096, %v789
        %v1113 = vadd.f32 %v1097, %v790
        %v1114 = vadd.f32 %v1098, %v791
        %v1115 = vadd.f32 %v1099, %v792
        %vm1116 = vcmp.ge.f32.partialorder %v1100, 0.0
        %vm1117 = vcmp.ge.f32.partialorder %v1101, 0.0
        %vm1118 = vcmp.ge.f32.partialorder %v1102, 0.0
        %vm1119 = vcmp.ge.f32.partialorder %v1103, 0.0
        %vm1120 = vcmp.ge.f32.partialorder %v1104, 0.0
        %vm1121 = vcmp.ge.f32.partialorder %v1105, 0.0
        %vm1122 = vcmp.ge.f32.partialorder %v1106, 0.0
        %vm1123 = vcmp.ge.f32.partialorder %v1107, 0.0
        %vm1124 = vcmp.ge.f32.partialorder %v1108, 0.0
        %vm1125 = vcmp.ge.f32.partialorder %v1109, 0.0
        %vm1126 = vcmp.ge.f32.partialorder %v1110, 0.0
        %vm1127 = vcmp.ge.f32.partialorder %v1111, 0.0
        %vm1128 = vcmp.ge.f32.partialorder %v1112, 0.0
        %vm1129 = vcmp.ge.f32.partialorder %v1113, 0.0
        %vm1130 = vcmp.ge.f32.partialorder %v1114, 0.0
        %vm1131 = vcmp.ge.f32.partialorder %v1115, 0.0
        %v1132 = vmul.f32 %v1100, 0.01
        %v1133 = vmul.f32 %v1101, 0.01
        %v1134 = vmul.f32 %v1102, 0.01
        %v1135 = vmul.f32 %v1103, 0.01
        %v1136 = vmul.f32 %v1104, 0.01
        %v1137 = vmul.f32 %v1105, 0.01
        %v1138 = vmul.f32 %v1106, 0.01
        %v1139 = vmul.f32 %v1107, 0.01
        %v1140 = vmul.f32 %v1108, 0.01
        %v1141 = vmul.f32 %v1109, 0.01
        %v1142 = vmul.f32 %v1110, 0.01
        %v1143 = vmul.f32 %v1111, 0.01
        %v1144 = vmul.f32 %v1112, 0.01
        %v1145 = vmul.f32 %v1113, 0.01
        %v1146 = vmul.f32 %v1114, 0.01
        %v1147 = vmul.f32 %v1115, 0.01
        %v1148 = vsel %vm1116, %v1100, %v1132
        %v1149 = vsel %vm1117, %v1101, %v1133
        %v1150 = vsel %vm1118, %v1102, %v1134
        %v1151 = vsel %vm1119, %v1103, %v1135
        %v1152 = vsel %vm1120, %v1104, %v1136
        %v1153 = vsel %vm1121, %v1105, %v1137
        %v1154 = vsel %vm1122, %v1106, %v1138
        %v1155 = vsel %vm1123, %v1107, %v1139
        %v1156 = vsel %vm1124, %v1108, %v1140
        %v1157 = vsel %vm1125, %v1109, %v1141
        %v1158 = vsel %vm1126, %v1110, %v1142
        %v1159 = vsel %vm1127, %v1111, %v1143
        %v1160 = vsel %vm1128, %v1112, %v1144
        %v1161 = vsel %vm1129, %v1113, %v1145
        %v1162 = vsel %vm1130, %v1114, %v1146
        %v1163 = vsel %vm1131, %v1115, %v1147
        %v1164 = vld [vmem:[%s397] sm:$0xff]
        %v1165 = vld [vmem:[%s397 + $0x8] sm:$0xff]
        %v1166 = vld [vmem:[%s397 + $0x10] sm:$0xff]
        %v1167 = vld [vmem:[%s397 + $0x18] sm:$0xff]
        %v1168 = vld [vmem:[%s397 + $0x20] sm:$0xff]
        %v1169 = vld [vmem:[%s397 + $0x28] sm:$0xff]
        %v1170 = vld [vmem:[%s397 + $0x30] sm:$0xff]
        %v1171 = vld [vmem:[%s397 + $0x38] sm:$0xff]
        %v1172 = vld [vmem:[%s397 + $0x40] sm:$0xff]
        %v1173 = vld [vmem:[%s397 + $0x48] sm:$0xff]
        %v1174 = vld [vmem:[%s397 + $0x50] sm:$0xff]
        %v1175 = vld [vmem:[%s397 + $0x58] sm:$0xff]
        %v1176 = vld [vmem:[%s397 + $0x60] sm:$0xff]
        %v1177 = vld [vmem:[%s397 + $0x68] sm:$0xff]
        %v1178 = vld [vmem:[%s397 + $0x70] sm:$0xff]
        %v1179 = vld [vmem:[%s397 + $0x78] sm:$0xff]
        %v1180 = vmul.f32 %v1164, %v1164
        %v1181 = vmul.f32 %v1165, %v1165
        %v1182 = vmul.f32 %v1166, %v1166
        %v1183 = vmul.f32 %v1167, %v1167
        %v1184 = vmul.f32 %v1168, %v1168
        %v1185 = vmul.f32 %v1169, %v1169
        %v1186 = vmul.f32 %v1170, %v1170
        %v1187 = vmul.f32 %v1171, %v1171
        %v1188 = vmul.f32 %v1172, %v1172
        %v1189 = vmul.f32 %v1173, %v1173
        %v1190 = vmul.f32 %v1174, %v1174
        %v1191 = vmul.f32 %v1175, %v1175
        %v1192 = vmul.f32 %v1176, %v1176
        %v1193 = vmul.f32 %v1177, %v1177
        %v1194 = vmul.f32 %v1178, %v1178
        %v1195 = vmul.f32 %v1179, %v1179
        %1196 = vadd.xlane.f32.xlu0 %v1180
        %v1197 = vpop.xlane.xlu0 %1196
        %1198 = vadd.xlane.f32.xlu0 %v1181
        %v1199 = vpop.xlane.xlu0 %1198
        %1200 = vadd.xlane.f32.xlu0 %v1182
        %v1201 = vpop.xlane.xlu0 %1200
        %1202 = vadd.xlane.f32.xlu0 %v1183
        %v1203 = vpop.xlane.xlu0 %1202
        %1204 = vadd.xlane.f32.xlu0 %v1184
        %v1205 = vpop.xlane.xlu0 %1204
        %1206 = vadd.xlane.f32.xlu0 %v1185
        %v1207 = vpop.xlane.xlu0 %1206
        %1208 = vadd.xlane.f32.xlu0 %v1186
        %v1209 = vpop.xlane.xlu0 %1208
        %1210 = vadd.xlane.f32.xlu0 %v1187
        %v1211 = vpop.xlane.xlu0 %1210
        %1212 = vadd.xlane.f32.xlu0 %v1188
        %v1213 = vpop.xlane.xlu0 %1212
        %1214 = vadd.xlane.f32.xlu0 %v1189
        %v1215 = vpop.xlane.xlu0 %1214
        %1216 = vadd.xlane.f32.xlu0 %v1190
        %v1217 = vpop.xlane.xlu0 %1216
        %1218 = vadd.xlane.f32.xlu0 %v1191
        %v1219 = vpop.xlane.xlu0 %1218
        %1220 = vadd.xlane.f32.xlu0 %v1192
        %v1221 = vpop.xlane.xlu0 %1220
        %1222 = vadd.xlane.f32.xlu0 %v1193
        %v1223 = vpop.xlane.xlu0 %1222
        %1224 = vadd.xlane.f32.xlu0 %v1194
        %v1225 = vpop.xlane.xlu0 %1224
        %1226 = vadd.xlane.f32.xlu0 %v1195
        %v1227 = vpop.xlane.xlu0 %1226
        %v1228 = vmax.f32 %v1197, 1e-24
        %v1229 = vmax.f32 %v1199, 1e-24
        %v1230 = vmax.f32 %v1201, 1e-24
        %v1231 = vmax.f32 %v1203, 1e-24
        %v1232 = vmax.f32 %v1205, 1e-24
        %v1233 = vmax.f32 %v1207, 1e-24
        %v1234 = vmax.f32 %v1209, 1e-24
        %v1235 = vmax.f32 %v1211, 1e-24
        %v1236 = vmax.f32 %v1213, 1e-24
        %v1237 = vmax.f32 %v1215, 1e-24
        %v1238 = vmax.f32 %v1217, 1e-24
        %v1239 = vmax.f32 %v1219, 1e-24
        %v1240 = vmax.f32 %v1221, 1e-24
        %v1241 = vmax.f32 %v1223, 1e-24
        %v1242 = vmax.f32 %v1225, 1e-24
        %v1243 = vmax.f32 %v1227, 1e-24
        %v1244 = vrsqrt.pop %v1228
        %v1245 = vmul.f32 %v1244, %v1228
        %v1246 = vmul.f32 %v1245, %v1244
        %v1247 = vmul.f32 0.5, %v1246
        %v1248 = vsub.f32 1.5, %v1247
        %v1249 = vmul.f32 %v1244, %v1248
        %vm1250 = vweird.f32 %v1228
        %vm1251 = vweird.f32 %v1244
        %vm1252 = vmor %vm1250, %vm1251
        %v1253 = vsel %vm1252, %v1244, %v1249
        %v1254 = vrsqrt.pop %v1229
        %v1255 = vmul.f32 %v1254, %v1229
        %v1256 = vmul.f32 %v1255, %v1254
        %v1257 = vmul.f32 0.5, %v1256
        %v1258 = vsub.f32 1.5, %v1257
        %v1259 = vmul.f32 %v1254, %v1258
        %vm1260 = vweird.f32 %v1229
        %vm1261 = vweird.f32 %v1254
        %vm1262 = vmor %vm1260, %vm1261
        %v1263 = vsel %vm1262, %v1254, %v1259
        %v1264 = vrsqrt.pop %v1230
        %v1265 = vmul.f32 %v1264, %v1230
        %v1266 = vmul.f32 %v1265, %v1264
        %v1267 = vmul.f32 0.5, %v1266
        %v1268 = vsub.f32 1.5, %v1267
        %v1269 = vmul.f32 %v1264, %v1268
        %vm1270 = vweird.f32 %v1230
        %vm1271 = vweird.f32 %v1264
        %vm1272 = vmor %vm1270, %vm1271
        %v1273 = vsel %vm1272, %v1264, %v1269
        %v1274 = vrsqrt.pop %v1231
        %v1275 = vmul.f32 %v1274, %v1231
        %v1276 = vmul.f32 %v1275, %v1274
        %v1277 = vmul.f32 0.5, %v1276
        %v1278 = vsub.f32 1.5, %v1277
        %v1279 = vmul.f32 %v1274, %v1278
        %vm1280 = vweird.f32 %v1231
        %vm1281 = vweird.f32 %v1274
        %vm1282 = vmor %vm1280, %vm1281
        %v1283 = vsel %vm1282, %v1274, %v1279
        %v1284 = vrsqrt.pop %v1232
        %v1285 = vmul.f32 %v1284, %v1232
        %v1286 = vmul.f32 %v1285, %v1284
        %v1287 = vmul.f32 0.5, %v1286
        %v1288 = vsub.f32 1.5, %v1287
        %v1289 = vmul.f32 %v1284, %v1288
        %vm1290 = vweird.f32 %v1232
        %vm1291 = vweird.f32 %v1284
        %vm1292 = vmor %vm1290, %vm1291
        %v1293 = vsel %vm1292, %v1284, %v1289
        %v1294 = vrsqrt.pop %v1233
        %v1295 = vmul.f32 %v1294, %v1233
        %v1296 = vmul.f32 %v1295, %v1294
        %v1297 = vmul.f32 0.5, %v1296
        %v1298 = vsub.f32 1.5, %v1297
        %v1299 = vmul.f32 %v1294, %v1298
        %vm1300 = vweird.f32 %v1233
        %vm1301 = vweird.f32 %v1294
        %vm1302 = vmor %vm1300, %vm1301
        %v1303 = vsel %vm1302, %v1294, %v1299
        %v1304 = vrsqrt.pop %v1234
        %v1305 = vmul.f32 %v1304, %v1234
        %v1306 = vmul.f32 %v1305, %v1304
        %v1307 = vmul.f32 0.5, %v1306
        %v1308 = vsub.f32 1.5, %v1307
        %v1309 = vmul.f32 %v1304, %v1308
        %vm1310 = vweird.f32 %v1234
        %vm1311 = vweird.f32 %v1304
        %vm1312 = vmor %vm1310, %vm1311
        %v1313 = vsel %vm1312, %v1304, %v1309
        %v1314 = vrsqrt.pop %v1235
        %v1315 = vmul.f32 %v1314, %v1235
        %v1316 = vmul.f32 %v1315, %v1314
        %v1317 = vmul.f32 0.5, %v1316
        %v1318 = vsub.f32 1.5, %v1317
        %v1319 = vmul.f32 %v1314, %v1318
        %vm1320 = vweird.f32 %v1235
        %vm1321 = vweird.f32 %v1314
        %vm1322 = vmor %vm1320, %vm1321
        %v1323 = vsel %vm1322, %v1314, %v1319
        %v1324 = vrsqrt.pop %v1236
        %v1325 = vmul.f32 %v1324, %v1236
        %v1326 = vmul.f32 %v1325, %v1324
        %v1327 = vmul.f32 0.5, %v1326
        %v1328 = vsub.f32 1.5, %v1327
        %v1329 = vmul.f32 %v1324, %v1328
        %vm1330 = vweird.f32 %v1236
        %vm1331 = vweird.f32 %v1324
        %vm1332 = vmor %vm1330, %vm1331
        %v1333 = vsel %vm1332, %v1324, %v1329
        %v1334 = vrsqrt.pop %v1237
        %v1335 = vmul.f32 %v1334, %v1237
        %v1336 = vmul.f32 %v1335, %v1334
        %v1337 = vmul.f32 0.5, %v1336
        %v1338 = vsub.f32 1.5, %v1337
        %v1339 = vmul.f32 %v1334, %v1338
        %vm1340 = vweird.f32 %v1237
        %vm1341 = vweird.f32 %v1334
        %vm1342 = vmor %vm1340, %vm1341
        %v1343 = vsel %vm1342, %v1334, %v1339
        %v1344 = vrsqrt.pop %v1238
        %v1345 = vmul.f32 %v1344, %v1238
        %v1346 = vmul.f32 %v1345, %v1344
        %v1347 = vmul.f32 0.5, %v1346
        %v1348 = vsub.f32 1.5, %v1347
        %v1349 = vmul.f32 %v1344, %v1348
        %vm1350 = vweird.f32 %v1238
        %vm1351 = vweird.f32 %v1344
        %vm1352 = vmor %vm1350, %vm1351
        %v1353 = vsel %vm1352, %v1344, %v1349
        %v1354 = vrsqrt.pop %v1239
        %v1355 = vmul.f32 %v1354, %v1239
        %v1356 = vmul.f32 %v1355, %v1354
        %v1357 = vmul.f32 0.5, %v1356
        %v1358 = vsub.f32 1.5, %v1357
        %v1359 = vmul.f32 %v1354, %v1358
        %vm1360 = vweird.f32 %v1239
        %vm1361 = vweird.f32 %v1354
        %vm1362 = vmor %vm1360, %vm1361
        %v1363 = vsel %vm1362, %v1354, %v1359
        %v1364 = vrsqrt.pop %v1240
        %v1365 = vmul.f32 %v1364, %v1240
        %v1366 = vmul.f32 %v1365, %v1364
        %v1367 = vmul.f32 0.5, %v1366
        %v1368 = vsub.f32 1.5, %v1367
        %v1369 = vmul.f32 %v1364, %v1368
        %vm1370 = vweird.f32 %v1240
        %vm1371 = vweird.f32 %v1364
        %vm1372 = vmor %vm1370, %vm1371
        %v1373 = vsel %vm1372, %v1364, %v1369
        %v1374 = vrsqrt.pop %v1241
        %v1375 = vmul.f32 %v1374, %v1241
        %v1376 = vmul.f32 %v1375, %v1374
        %v1377 = vmul.f32 0.5, %v1376
        %v1378 = vsub.f32 1.5, %v1377
        %v1379 = vmul.f32 %v1374, %v1378
        %vm1380 = vweird.f32 %v1241
        %vm1381 = vweird.f32 %v1374
        %vm1382 = vmor %vm1380, %vm1381
        %v1383 = vsel %vm1382, %v1374, %v1379
        %v1384 = vrsqrt.pop %v1242
        %v1385 = vmul.f32 %v1384, %v1242
        %v1386 = vmul.f32 %v1385, %v1384
        %v1387 = vmul.f32 0.5, %v1386
        %v1388 = vsub.f32 1.5, %v1387
        %v1389 = vmul.f32 %v1384, %v1388
        %vm1390 = vweird.f32 %v1242
        %vm1391 = vweird.f32 %v1384
        %vm1392 = vmor %vm1390, %vm1391
        %v1393 = vsel %vm1392, %v1384, %v1389
        %v1394 = vrsqrt.pop %v1243
        %v1395 = vmul.f32 %v1394, %v1243
        %v1396 = vmul.f32 %v1395, %v1394
        %v1397 = vmul.f32 0.5, %v1396
        %v1398 = vsub.f32 1.5, %v1397
        %v1399 = vmul.f32 %v1394, %v1398
        %vm1400 = vweird.f32 %v1243
        %vm1401 = vweird.f32 %v1394
        %vm1402 = vmor %vm1400, %vm1401
        %v1403 = vsel %vm1402, %v1394, %v1399
        %v1404 = vmul.f32 %v1164, %v1034
        %v1405 = vmul.f32 %v1165, %v1034
        %v1406 = vmul.f32 %v1166, %v1034
        %v1407 = vmul.f32 %v1167, %v1034
        %v1408 = vmul.f32 %v1168, %v1034
        %v1409 = vmul.f32 %v1169, %v1034
        %v1410 = vmul.f32 %v1170, %v1034
        %v1411 = vmul.f32 %v1171, %v1034
        %v1412 = vmul.f32 %v1172, %v1034
        %v1413 = vmul.f32 %v1173, %v1034
        %v1414 = vmul.f32 %v1174, %v1034
        %v1415 = vmul.f32 %v1175, %v1034
        %v1416 = vmul.f32 %v1176, %v1034
        %v1417 = vmul.f32 %v1177, %v1034
        %v1418 = vmul.f32 %v1178, %v1034
        %v1419 = vmul.f32 %v1179, %v1034
        %1420 = vadd.xlane.f32.xlu0 %v1404
        %v1421 = vpop.xlane.xlu0 %1420
        %1422 = vadd.xlane.f32.xlu0 %v1405
        %v1423 = vpop.xlane.xlu0 %1422
        %1424 = vadd.xlane.f32.xlu0 %v1406
        %v1425 = vpop.xlane.xlu0 %1424
        %1426 = vadd.xlane.f32.xlu0 %v1407
        %v1427 = vpop.xlane.xlu0 %1426
        %1428 = vadd.xlane.f32.xlu0 %v1408
        %v1429 = vpop.xlane.xlu0 %1428
        %1430 = vadd.xlane.f32.xlu0 %v1409
        %v1431 = vpop.xlane.xlu0 %1430
        %1432 = vadd.xlane.f32.xlu0 %v1410
        %v1433 = vpop.xlane.xlu0 %1432
        %1434 = vadd.xlane.f32.xlu0 %v1411
        %v1435 = vpop.xlane.xlu0 %1434
        %1436 = vadd.xlane.f32.xlu0 %v1412
        %v1437 = vpop.xlane.xlu0 %1436
        %1438 = vadd.xlane.f32.xlu0 %v1413
        %v1439 = vpop.xlane.xlu0 %1438
        %1440 = vadd.xlane.f32.xlu0 %v1414
        %v1441 = vpop.xlane.xlu0 %1440
        %1442 = vadd.xlane.f32.xlu0 %v1415
        %v1443 = vpop.xlane.xlu0 %1442
        %1444 = vadd.xlane.f32.xlu0 %v1416
        %v1445 = vpop.xlane.xlu0 %1444
        %1446 = vadd.xlane.f32.xlu0 %v1417
        %v1447 = vpop.xlane.xlu0 %1446
        %1448 = vadd.xlane.f32.xlu0 %v1418
        %v1449 = vpop.xlane.xlu0 %1448
        %1450 = vadd.xlane.f32.xlu0 %v1419
        %v1451 = vpop.xlane.xlu0 %1450
        %v1452 = vmul.f32 %v1421, %v1253
        %v1453 = vmul.f32 %v1423, %v1263
        %v1454 = vmul.f32 %v1425, %v1273
        %v1455 = vmul.f32 %v1427, %v1283
        %v1456 = vmul.f32 %v1429, %v1293
        %v1457 = vmul.f32 %v1431, %v1303
        %v1458 = vmul.f32 %v1433, %v1313
        %v1459 = vmul.f32 %v1435, %v1323
        %v1460 = vmul.f32 %v1437, %v1333
        %v1461 = vmul.f32 %v1439, %v1343
        %v1462 = vmul.f32 %v1441, %v1353
        %v1463 = vmul.f32 %v1443, %v1363
        %v1464 = vmul.f32 %v1445, %v1373
        %v1465 = vmul.f32 %v1447, %v1383
        %v1466 = vmul.f32 %v1449, %v1393
        %v1467 = vmul.f32 %v1451, %v1403
        %v1468 = vadd.f32 %v1452, %v777
        %v1469 = vadd.f32 %v1453, %v778
        %v1470 = vadd.f32 %v1454, %v779
        %v1471 = vadd.f32 %v1455, %v780
        %v1472 = vadd.f32 %v1456, %v781
        %v1473 = vadd.f32 %v1457, %v782
        %v1474 = vadd.f32 %v1458, %v783
        %v1475 = vadd.f32 %v1459, %v784
        %v1476 = vadd.f32 %v1460, %v785
        %v1477 = vadd.f32 %v1461, %v786
        %v1478 = vadd.f32 %v1462, %v787
        %v1479 = vadd.f32 %v1463, %v788
        %v1480 = vadd.f32 %v1464, %v789
        %v1481 = vadd.f32 %v1465, %v790
        %v1482 = vadd.f32 %v1466, %v791
        %v1483 = vadd.f32 %v1467, %v792
        %vm1484 = vcmp.ge.f32.partialorder %v1468, 0.0
        %vm1485 = vcmp.ge.f32.partialorder %v1469, 0.0
        %vm1486 = vcmp.ge.f32.partialorder %v1470, 0.0
        %vm1487 = vcmp.ge.f32.partialorder %v1471, 0.0
        %vm1488 = vcmp.ge.f32.partialorder %v1472, 0.0
        %vm1489 = vcmp.ge.f32.partialorder %v1473, 0.0
        %vm1490 = vcmp.ge.f32.partialorder %v1474, 0.0
        %vm1491 = vcmp.ge.f32.partialorder %v1475, 0.0
        %vm1492 = vcmp.ge.f32.partialorder %v1476, 0.0
        %vm1493 = vcmp.ge.f32.partialorder %v1477, 0.0
        %vm1494 = vcmp.ge.f32.partialorder %v1478, 0.0
        %vm1495 = vcmp.ge.f32.partialorder %v1479, 0.0
        %vm1496 = vcmp.ge.f32.partialorder %v1480, 0.0
        %vm1497 = vcmp.ge.f32.partialorder %v1481, 0.0
        %vm1498 = vcmp.ge.f32.partialorder %v1482, 0.0
        %vm1499 = vcmp.ge.f32.partialorder %v1483, 0.0
        %v1500 = vmul.f32 %v1468, 0.01
        %v1501 = vmul.f32 %v1469, 0.01
        %v1502 = vmul.f32 %v1470, 0.01
        %v1503 = vmul.f32 %v1471, 0.01
        %v1504 = vmul.f32 %v1472, 0.01
        %v1505 = vmul.f32 %v1473, 0.01
        %v1506 = vmul.f32 %v1474, 0.01
        %v1507 = vmul.f32 %v1475, 0.01
        %v1508 = vmul.f32 %v1476, 0.01
        %v1509 = vmul.f32 %v1477, 0.01
        %v1510 = vmul.f32 %v1478, 0.01
        %v1511 = vmul.f32 %v1479, 0.01
        %v1512 = vmul.f32 %v1480, 0.01
        %v1513 = vmul.f32 %v1481, 0.01
        %v1514 = vmul.f32 %v1482, 0.01
        %v1515 = vmul.f32 %v1483, 0.01
        %v1516 = vsel %vm1484, %v1468, %v1500
        %v1517 = vsel %vm1485, %v1469, %v1501
        %v1518 = vsel %vm1486, %v1470, %v1502
        %v1519 = vsel %vm1487, %v1471, %v1503
        %v1520 = vsel %vm1488, %v1472, %v1504
        %v1521 = vsel %vm1489, %v1473, %v1505
        %v1522 = vsel %vm1490, %v1474, %v1506
        %v1523 = vsel %vm1491, %v1475, %v1507
        %v1524 = vsel %vm1492, %v1476, %v1508
        %v1525 = vsel %vm1493, %v1477, %v1509
        %v1526 = vsel %vm1494, %v1478, %v1510
        %v1527 = vsel %vm1495, %v1479, %v1511
        %v1528 = vsel %vm1496, %v1480, %v1512
        %v1529 = vsel %vm1497, %v1481, %v1513
        %v1530 = vsel %vm1498, %v1482, %v1514
        %v1531 = vsel %vm1499, %v1483, %v1515
        %v1532 = vld [vmem:[%s407] sm:$0xff]
        %v1533 = vld [vmem:[%s407 + $0x8] sm:$0xff]
        %v1534 = vld [vmem:[%s407 + $0x10] sm:$0xff]
        %v1535 = vld [vmem:[%s407 + $0x18] sm:$0xff]
        %v1536 = vld [vmem:[%s407 + $0x20] sm:$0xff]
        %v1537 = vld [vmem:[%s407 + $0x28] sm:$0xff]
        %v1538 = vld [vmem:[%s407 + $0x30] sm:$0xff]
        %v1539 = vld [vmem:[%s407 + $0x38] sm:$0xff]
        %v1540 = vld [vmem:[%s407 + $0x40] sm:$0xff]
        %v1541 = vld [vmem:[%s407 + $0x48] sm:$0xff]
        %v1542 = vld [vmem:[%s407 + $0x50] sm:$0xff]
        %v1543 = vld [vmem:[%s407 + $0x58] sm:$0xff]
        %v1544 = vld [vmem:[%s407 + $0x60] sm:$0xff]
        %v1545 = vld [vmem:[%s407 + $0x68] sm:$0xff]
        %v1546 = vld [vmem:[%s407 + $0x70] sm:$0xff]
        %v1547 = vld [vmem:[%s407 + $0x78] sm:$0xff]
        %v1548 = vmul.f32 %v1532, %v1532
        %v1549 = vmul.f32 %v1533, %v1533
        %v1550 = vmul.f32 %v1534, %v1534
        %v1551 = vmul.f32 %v1535, %v1535
        %v1552 = vmul.f32 %v1536, %v1536
        %v1553 = vmul.f32 %v1537, %v1537
        %v1554 = vmul.f32 %v1538, %v1538
        %v1555 = vmul.f32 %v1539, %v1539
        %v1556 = vmul.f32 %v1540, %v1540
        %v1557 = vmul.f32 %v1541, %v1541
        %v1558 = vmul.f32 %v1542, %v1542
        %v1559 = vmul.f32 %v1543, %v1543
        %v1560 = vmul.f32 %v1544, %v1544
        %v1561 = vmul.f32 %v1545, %v1545
        %v1562 = vmul.f32 %v1546, %v1546
        %v1563 = vmul.f32 %v1547, %v1547
        %1564 = vadd.xlane.f32.xlu0 %v1548
        %v1565 = vpop.xlane.xlu0 %1564
        %1566 = vadd.xlane.f32.xlu0 %v1549
        %v1567 = vpop.xlane.xlu0 %1566
        %1568 = vadd.xlane.f32.xlu0 %v1550
        %v1569 = vpop.xlane.xlu0 %1568
        %1570 = vadd.xlane.f32.xlu0 %v1551
        %v1571 = vpop.xlane.xlu0 %1570
        %1572 = vadd.xlane.f32.xlu0 %v1552
        %v1573 = vpop.xlane.xlu0 %1572
        %1574 = vadd.xlane.f32.xlu0 %v1553
        %v1575 = vpop.xlane.xlu0 %1574
        %1576 = vadd.xlane.f32.xlu0 %v1554
        %v1577 = vpop.xlane.xlu0 %1576
        %1578 = vadd.xlane.f32.xlu0 %v1555
        %v1579 = vpop.xlane.xlu0 %1578
        %1580 = vadd.xlane.f32.xlu0 %v1556
        %v1581 = vpop.xlane.xlu0 %1580
        %1582 = vadd.xlane.f32.xlu0 %v1557
        %v1583 = vpop.xlane.xlu0 %1582
        %1584 = vadd.xlane.f32.xlu0 %v1558
        %v1585 = vpop.xlane.xlu0 %1584
        %1586 = vadd.xlane.f32.xlu0 %v1559
        %v1587 = vpop.xlane.xlu0 %1586
        %1588 = vadd.xlane.f32.xlu0 %v1560
        %v1589 = vpop.xlane.xlu0 %1588
        %1590 = vadd.xlane.f32.xlu0 %v1561
        %v1591 = vpop.xlane.xlu0 %1590
        %1592 = vadd.xlane.f32.xlu0 %v1562
        %v1593 = vpop.xlane.xlu0 %1592
        %1594 = vadd.xlane.f32.xlu0 %v1563
        %v1595 = vpop.xlane.xlu0 %1594
        %v1596 = vmax.f32 %v1565, 1e-24
        %v1597 = vmax.f32 %v1567, 1e-24
        %v1598 = vmax.f32 %v1569, 1e-24
        %v1599 = vmax.f32 %v1571, 1e-24
        %v1600 = vmax.f32 %v1573, 1e-24
        %v1601 = vmax.f32 %v1575, 1e-24
        %v1602 = vmax.f32 %v1577, 1e-24
        %v1603 = vmax.f32 %v1579, 1e-24
        %v1604 = vmax.f32 %v1581, 1e-24
        %v1605 = vmax.f32 %v1583, 1e-24
        %v1606 = vmax.f32 %v1585, 1e-24
        %v1607 = vmax.f32 %v1587, 1e-24
        %v1608 = vmax.f32 %v1589, 1e-24
        %v1609 = vmax.f32 %v1591, 1e-24
        %v1610 = vmax.f32 %v1593, 1e-24
        %v1611 = vmax.f32 %v1595, 1e-24
        %v1612 = vrsqrt.pop %v1596
        %v1613 = vmul.f32 %v1612, %v1596
        %v1614 = vmul.f32 %v1613, %v1612
        %v1615 = vmul.f32 0.5, %v1614
        %v1616 = vsub.f32 1.5, %v1615
        %v1617 = vmul.f32 %v1612, %v1616
        %vm1618 = vweird.f32 %v1596
        %vm1619 = vweird.f32 %v1612
        %vm1620 = vmor %vm1618, %vm1619
        %v1621 = vsel %vm1620, %v1612, %v1617
        %v1622 = vrsqrt.pop %v1597
        %v1623 = vmul.f32 %v1622, %v1597
        %v1624 = vmul.f32 %v1623, %v1622
        %v1625 = vmul.f32 0.5, %v1624
        %v1626 = vsub.f32 1.5, %v1625
        %v1627 = vmul.f32 %v1622, %v1626
        %vm1628 = vweird.f32 %v1597
        %vm1629 = vweird.f32 %v1622
        %vm1630 = vmor %vm1628, %vm1629
        %v1631 = vsel %vm1630, %v1622, %v1627
        %v1632 = vrsqrt.pop %v1598
        %v1633 = vmul.f32 %v1632, %v1598
        %v1634 = vmul.f32 %v1633, %v1632
        %v1635 = vmul.f32 0.5, %v1634
        %v1636 = vsub.f32 1.5, %v1635
        %v1637 = vmul.f32 %v1632, %v1636
        %vm1638 = vweird.f32 %v1598
        %vm1639 = vweird.f32 %v1632
        %vm1640 = vmor %vm1638, %vm1639
        %v1641 = vsel %vm1640, %v1632, %v1637
        %v1642 = vrsqrt.pop %v1599
        %v1643 = vmul.f32 %v1642, %v1599
        %v1644 = vmul.f32 %v1643, %v1642
        %v1645 = vmul.f32 0.5, %v1644
        %v1646 = vsub.f32 1.5, %v1645
        %v1647 = vmul.f32 %v1642, %v1646
        %vm1648 = vweird.f32 %v1599
        %vm1649 = vweird.f32 %v1642
        %vm1650 = vmor %vm1648, %vm1649
        %v1651 = vsel %vm1650, %v1642, %v1647
        %v1652 = vrsqrt.pop %v1600
        %v1653 = vmul.f32 %v1652, %v1600
        %v1654 = vmul.f32 %v1653, %v1652
        %v1655 = vmul.f32 0.5, %v1654
        %v1656 = vsub.f32 1.5, %v1655
        %v1657 = vmul.f32 %v1652, %v1656
        %vm1658 = vweird.f32 %v1600
        %vm1659 = vweird.f32 %v1652
        %vm1660 = vmor %vm1658, %vm1659
        %v1661 = vsel %vm1660, %v1652, %v1657
        %v1662 = vrsqrt.pop %v1601
        %v1663 = vmul.f32 %v1662, %v1601
        %v1664 = vmul.f32 %v1663, %v1662
        %v1665 = vmul.f32 0.5, %v1664
        %v1666 = vsub.f32 1.5, %v1665
        %v1667 = vmul.f32 %v1662, %v1666
        %vm1668 = vweird.f32 %v1601
        %vm1669 = vweird.f32 %v1662
        %vm1670 = vmor %vm1668, %vm1669
        %v1671 = vsel %vm1670, %v1662, %v1667
        %v1672 = vrsqrt.pop %v1602
        %v1673 = vmul.f32 %v1672, %v1602
        %v1674 = vmul.f32 %v1673, %v1672
        %v1675 = vmul.f32 0.5, %v1674
        %v1676 = vsub.f32 1.5, %v1675
        %v1677 = vmul.f32 %v1672, %v1676
        %vm1678 = vweird.f32 %v1602
        %vm1679 = vweird.f32 %v1672
        %vm1680 = vmor %vm1678, %vm1679
        %v1681 = vsel %vm1680, %v1672, %v1677
        %v1682 = vrsqrt.pop %v1603
        %v1683 = vmul.f32 %v1682, %v1603
        %v1684 = vmul.f32 %v1683, %v1682
        %v1685 = vmul.f32 0.5, %v1684
        %v1686 = vsub.f32 1.5, %v1685
        %v1687 = vmul.f32 %v1682, %v1686
        %vm1688 = vweird.f32 %v1603
        %vm1689 = vweird.f32 %v1682
        %vm1690 = vmor %vm1688, %vm1689
        %v1691 = vsel %vm1690, %v1682, %v1687
        %v1692 = vrsqrt.pop %v1604
        %v1693 = vmul.f32 %v1692, %v1604
        %v1694 = vmul.f32 %v1693, %v1692
        %v1695 = vmul.f32 0.5, %v1694
        %v1696 = vsub.f32 1.5, %v1695
        %v1697 = vmul.f32 %v1692, %v1696
        %vm1698 = vweird.f32 %v1604
        %vm1699 = vweird.f32 %v1692
        %vm1700 = vmor %vm1698, %vm1699
        %v1701 = vsel %vm1700, %v1692, %v1697
        %v1702 = vrsqrt.pop %v1605
        %v1703 = vmul.f32 %v1702, %v1605
        %v1704 = vmul.f32 %v1703, %v1702
        %v1705 = vmul.f32 0.5, %v1704
        %v1706 = vsub.f32 1.5, %v1705
        %v1707 = vmul.f32 %v1702, %v1706
        %vm1708 = vweird.f32 %v1605
        %vm1709 = vweird.f32 %v1702
        %vm1710 = vmor %vm1708, %vm1709
        %v1711 = vsel %vm1710, %v1702, %v1707
        %v1712 = vrsqrt.pop %v1606
        %v1713 = vmul.f32 %v1712, %v1606
        %v1714 = vmul.f32 %v1713, %v1712
        %v1715 = vmul.f32 0.5, %v1714
        %v1716 = vsub.f32 1.5, %v1715
        %v1717 = vmul.f32 %v1712, %v1716
        %vm1718 = vweird.f32 %v1606
        %vm1719 = vweird.f32 %v1712
        %vm1720 = vmor %vm1718, %vm1719
        %v1721 = vsel %vm1720, %v1712, %v1717
        %v1722 = vrsqrt.pop %v1607
        %v1723 = vmul.f32 %v1722, %v1607
        %v1724 = vmul.f32 %v1723, %v1722
        %v1725 = vmul.f32 0.5, %v1724
        %v1726 = vsub.f32 1.5, %v1725
        %v1727 = vmul.f32 %v1722, %v1726
        %vm1728 = vweird.f32 %v1607
        %vm1729 = vweird.f32 %v1722
        %vm1730 = vmor %vm1728, %vm1729
        %v1731 = vsel %vm1730, %v1722, %v1727
        %v1732 = vrsqrt.pop %v1608
        %v1733 = vmul.f32 %v1732, %v1608
        %v1734 = vmul.f32 %v1733, %v1732
        %v1735 = vmul.f32 0.5, %v1734
        %v1736 = vsub.f32 1.5, %v1735
        %v1737 = vmul.f32 %v1732, %v1736
        %vm1738 = vweird.f32 %v1608
        %vm1739 = vweird.f32 %v1732
        %vm1740 = vmor %vm1738, %vm1739
        %v1741 = vsel %vm1740, %v1732, %v1737
        %v1742 = vrsqrt.pop %v1609
        %v1743 = vmul.f32 %v1742, %v1609
        %v1744 = vmul.f32 %v1743, %v1742
        %v1745 = vmul.f32 0.5, %v1744
        %v1746 = vsub.f32 1.5, %v1745
        %v1747 = vmul.f32 %v1742, %v1746
        %vm1748 = vweird.f32 %v1609
        %vm1749 = vweird.f32 %v1742
        %vm1750 = vmor %vm1748, %vm1749
        %v1751 = vsel %vm1750, %v1742, %v1747
        %v1752 = vrsqrt.pop %v1610
        %v1753 = vmul.f32 %v1752, %v1610
        %v1754 = vmul.f32 %v1753, %v1752
        %v1755 = vmul.f32 0.5, %v1754
        %v1756 = vsub.f32 1.5, %v1755
        %v1757 = vmul.f32 %v1752, %v1756
        %vm1758 = vweird.f32 %v1610
        %vm1759 = vweird.f32 %v1752
        %vm1760 = vmor %vm1758, %vm1759
        %v1761 = vsel %vm1760, %v1752, %v1757
        %v1762 = vrsqrt.pop %v1611
        %v1763 = vmul.f32 %v1762, %v1611
        %v1764 = vmul.f32 %v1763, %v1762
        %v1765 = vmul.f32 0.5, %v1764
        %v1766 = vsub.f32 1.5, %v1765
        %v1767 = vmul.f32 %v1762, %v1766
        %vm1768 = vweird.f32 %v1611
        %vm1769 = vweird.f32 %v1762
        %vm1770 = vmor %vm1768, %vm1769
        %v1771 = vsel %vm1770, %v1762, %v1767
        %v1772 = vmul.f32 %v1532, %v1034
        %v1773 = vmul.f32 %v1533, %v1034
        %v1774 = vmul.f32 %v1534, %v1034
        %v1775 = vmul.f32 %v1535, %v1034
        %v1776 = vmul.f32 %v1536, %v1034
        %v1777 = vmul.f32 %v1537, %v1034
        %v1778 = vmul.f32 %v1538, %v1034
        %v1779 = vmul.f32 %v1539, %v1034
        %v1780 = vmul.f32 %v1540, %v1034
        %v1781 = vmul.f32 %v1541, %v1034
        %v1782 = vmul.f32 %v1542, %v1034
        %v1783 = vmul.f32 %v1543, %v1034
        %v1784 = vmul.f32 %v1544, %v1034
        %v1785 = vmul.f32 %v1545, %v1034
        %v1786 = vmul.f32 %v1546, %v1034
        %v1787 = vmul.f32 %v1547, %v1034
        %1788 = vadd.xlane.f32.xlu0 %v1772
        %v1789 = vpop.xlane.xlu0 %1788
        %1790 = vadd.xlane.f32.xlu0 %v1773
        %v1791 = vpop.xlane.xlu0 %1790
        %1792 = vadd.xlane.f32.xlu0 %v1774
        %v1793 = vpop.xlane.xlu0 %1792
        %1794 = vadd.xlane.f32.xlu0 %v1775
        %v1795 = vpop.xlane.xlu0 %1794
        %1796 = vadd.xlane.f32.xlu0 %v1776
        %v1797 = vpop.xlane.xlu0 %1796
        %1798 = vadd.xlane.f32.xlu0 %v1777
        %v1799 = vpop.xlane.xlu0 %1798
        %1800 = vadd.xlane.f32.xlu0 %v1778
        %v1801 = vpop.xlane.xlu0 %1800
        %1802 = vadd.xlane.f32.xlu0 %v1779
        %v1803 = vpop.xlane.xlu0 %1802
        %1804 = vadd.xlane.f32.xlu0 %v1780
        %v1805 = vpop.xlane.xlu0 %1804
        %1806 = vadd.xlane.f32.xlu0 %v1781
        %v1807 = vpop.xlane.xlu0 %1806
        %1808 = vadd.xlane.f32.xlu0 %v1782
        %v1809 = vpop.xlane.xlu0 %1808
        %1810 = vadd.xlane.f32.xlu0 %v1783
        %v1811 = vpop.xlane.xlu0 %1810
        %1812 = vadd.xlane.f32.xlu0 %v1784
        %v1813 = vpop.xlane.xlu0 %1812
        %1814 = vadd.xlane.f32.xlu0 %v1785
        %v1815 = vpop.xlane.xlu0 %1814
        %1816 = vadd.xlane.f32.xlu0 %v1786
        %v1817 = vpop.xlane.xlu0 %1816
        %1818 = vadd.xlane.f32.xlu0 %v1787
        %v1819 = vpop.xlane.xlu0 %1818
        %v1820 = vmul.f32 %v1789, %v1621
        %v1821 = vmul.f32 %v1791, %v1631
        %v1822 = vmul.f32 %v1793, %v1641
        %v1823 = vmul.f32 %v1795, %v1651
        %v1824 = vmul.f32 %v1797, %v1661
        %v1825 = vmul.f32 %v1799, %v1671
        %v1826 = vmul.f32 %v1801, %v1681
        %v1827 = vmul.f32 %v1803, %v1691
        %v1828 = vmul.f32 %v1805, %v1701
        %v1829 = vmul.f32 %v1807, %v1711
        %v1830 = vmul.f32 %v1809, %v1721
        %v1831 = vmul.f32 %v1811, %v1731
        %v1832 = vmul.f32 %v1813, %v1741
        %v1833 = vmul.f32 %v1815, %v1751
        %v1834 = vmul.f32 %v1817, %v1761
        %v1835 = vmul.f32 %v1819, %v1771
        %v1836 = vadd.f32 %v1820, %v777
        %v1837 = vadd.f32 %v1821, %v778
        %v1838 = vadd.f32 %v1822, %v779
        %v1839 = vadd.f32 %v1823, %v780
        %v1840 = vadd.f32 %v1824, %v781
        %v1841 = vadd.f32 %v1825, %v782
        %v1842 = vadd.f32 %v1826, %v783
        %v1843 = vadd.f32 %v1827, %v784
        %v1844 = vadd.f32 %v1828, %v785
        %v1845 = vadd.f32 %v1829, %v786
        %v1846 = vadd.f32 %v1830, %v787
        %v1847 = vadd.f32 %v1831, %v788
        %v1848 = vadd.f32 %v1832, %v789
        %v1849 = vadd.f32 %v1833, %v790
        %v1850 = vadd.f32 %v1834, %v791
        %v1851 = vadd.f32 %v1835, %v792
        %vm1852 = vcmp.ge.f32.partialorder %v1836, 0.0
        %vm1853 = vcmp.ge.f32.partialorder %v1837, 0.0
        %vm1854 = vcmp.ge.f32.partialorder %v1838, 0.0
        %vm1855 = vcmp.ge.f32.partialorder %v1839, 0.0
        %vm1856 = vcmp.ge.f32.partialorder %v1840, 0.0
        %vm1857 = vcmp.ge.f32.partialorder %v1841, 0.0
        %vm1858 = vcmp.ge.f32.partialorder %v1842, 0.0
        %vm1859 = vcmp.ge.f32.partialorder %v1843, 0.0
        %vm1860 = vcmp.ge.f32.partialorder %v1844, 0.0
        %vm1861 = vcmp.ge.f32.partialorder %v1845, 0.0
        %vm1862 = vcmp.ge.f32.partialorder %v1846, 0.0
        %vm1863 = vcmp.ge.f32.partialorder %v1847, 0.0
        %vm1864 = vcmp.ge.f32.partialorder %v1848, 0.0
        %vm1865 = vcmp.ge.f32.partialorder %v1849, 0.0
        %vm1866 = vcmp.ge.f32.partialorder %v1850, 0.0
        %vm1867 = vcmp.ge.f32.partialorder %v1851, 0.0
        %v1868 = vmul.f32 %v1836, 0.01
        %v1869 = vmul.f32 %v1837, 0.01
        %v1870 = vmul.f32 %v1838, 0.01
        %v1871 = vmul.f32 %v1839, 0.01
        %v1872 = vmul.f32 %v1840, 0.01
        %v1873 = vmul.f32 %v1841, 0.01
        %v1874 = vmul.f32 %v1842, 0.01
        %v1875 = vmul.f32 %v1843, 0.01
        %v1876 = vmul.f32 %v1844, 0.01
        %v1877 = vmul.f32 %v1845, 0.01
        %v1878 = vmul.f32 %v1846, 0.01
        %v1879 = vmul.f32 %v1847, 0.01
        %v1880 = vmul.f32 %v1848, 0.01
        %v1881 = vmul.f32 %v1849, 0.01
        %v1882 = vmul.f32 %v1850, 0.01
        %v1883 = vmul.f32 %v1851, 0.01
        %v1884 = vsel %vm1852, %v1836, %v1868
        %v1885 = vsel %vm1853, %v1837, %v1869
        %v1886 = vsel %vm1854, %v1838, %v1870
        %v1887 = vsel %vm1855, %v1839, %v1871
        %v1888 = vsel %vm1856, %v1840, %v1872
        %v1889 = vsel %vm1857, %v1841, %v1873
        %v1890 = vsel %vm1858, %v1842, %v1874
        %v1891 = vsel %vm1859, %v1843, %v1875
        %v1892 = vsel %vm1860, %v1844, %v1876
        %v1893 = vsel %vm1861, %v1845, %v1877
        %v1894 = vsel %vm1862, %v1846, %v1878
        %v1895 = vsel %vm1863, %v1847, %v1879
        %v1896 = vsel %vm1864, %v1848, %v1880
        %v1897 = vsel %vm1865, %v1849, %v1881
        %v1898 = vsel %vm1866, %v1850, %v1882
        %v1899 = vsel %vm1867, %v1851, %v1883
        %v1900 = vmax.f32 %v1148, %v1516
        %v1901 = vmax.f32 %v1149, %v1517
        %v1902 = vmax.f32 %v1150, %v1518
        %v1903 = vmax.f32 %v1151, %v1519
        %v1904 = vmax.f32 %v1152, %v1520
        %v1905 = vmax.f32 %v1153, %v1521
        %v1906 = vmax.f32 %v1154, %v1522
        %v1907 = vmax.f32 %v1155, %v1523
        %v1908 = vmax.f32 %v1156, %v1524
        %v1909 = vmax.f32 %v1157, %v1525
        %v1910 = vmax.f32 %v1158, %v1526
        %v1911 = vmax.f32 %v1159, %v1527
        %v1912 = vmax.f32 %v1160, %v1528
        %v1913 = vmax.f32 %v1161, %v1529
        %v1914 = vmax.f32 %v1162, %v1530
        %v1915 = vmax.f32 %v1163, %v1531
        %v1916 = vmax.f32 %v1900, %v1884
        %v1917 = vmax.f32 %v1901, %v1885
        %v1918 = vmax.f32 %v1902, %v1886
        %v1919 = vmax.f32 %v1903, %v1887
        %v1920 = vmax.f32 %v1904, %v1888
        %v1921 = vmax.f32 %v1905, %v1889
        %v1922 = vmax.f32 %v1906, %v1890
        %v1923 = vmax.f32 %v1907, %v1891
        %v1924 = vmax.f32 %v1908, %v1892
        %v1925 = vmax.f32 %v1909, %v1893
        %v1926 = vmax.f32 %v1910, %v1894
        %v1927 = vmax.f32 %v1911, %v1895
        %v1928 = vmax.f32 %v1912, %v1896
        %v1929 = vmax.f32 %v1913, %v1897
        %v1930 = vmax.f32 %v1914, %v1898
        %v1931 = vmax.f32 %v1915, %v1899
        %v1932 = vsub.f32 %v1148, %v1916
        %v1933 = vsub.f32 %v1149, %v1917
        %v1934 = vsub.f32 %v1150, %v1918
        %v1935 = vsub.f32 %v1151, %v1919
        %v1936 = vsub.f32 %v1152, %v1920
        %v1937 = vsub.f32 %v1153, %v1921
        %v1938 = vsub.f32 %v1154, %v1922
        %v1939 = vsub.f32 %v1155, %v1923
        %v1940 = vsub.f32 %v1156, %v1924
        %v1941 = vsub.f32 %v1157, %v1925
        %v1942 = vsub.f32 %v1158, %v1926
        %v1943 = vsub.f32 %v1159, %v1927
        %v1944 = vsub.f32 %v1160, %v1928
        %v1945 = vsub.f32 %v1161, %v1929
        %v1946 = vsub.f32 %v1162, %v1930
        %v1947 = vsub.f32 %v1163, %v1931
        %v1948 = vmul.f32 %v1932, 1.442695
        %v1949 = vpow.pop %v1948
        %v1950 = vmul.f32 %v1933, 1.442695
        %v1951 = vpow.pop %v1950
        %v1952 = vmul.f32 %v1934, 1.442695
        %v1953 = vpow.pop %v1952
        %v1954 = vmul.f32 %v1935, 1.442695
        %v1955 = vpow.pop %v1954
        %v1956 = vmul.f32 %v1936, 1.442695
        %v1957 = vpow.pop %v1956
        %v1958 = vmul.f32 %v1937, 1.442695
        %v1959 = vpow.pop %v1958
        %v1960 = vmul.f32 %v1938, 1.442695
        %v1961 = vpow.pop %v1960
        %v1962 = vmul.f32 %v1939, 1.442695
        %v1963 = vpow.pop %v1962
        %v1964 = vmul.f32 %v1940, 1.442695
        %v1965 = vpow.pop %v1964
        %v1966 = vmul.f32 %v1941, 1.442695
        %v1967 = vpow.pop %v1966
        %v1968 = vmul.f32 %v1942, 1.442695
        %v1969 = vpow.pop %v1968
        %v1970 = vmul.f32 %v1943, 1.442695
        %v1971 = vpow.pop %v1970
        %v1972 = vmul.f32 %v1944, 1.442695
        %v1973 = vpow.pop %v1972
        %v1974 = vmul.f32 %v1945, 1.442695
        %v1975 = vpow.pop %v1974
        %v1976 = vmul.f32 %v1946, 1.442695
        %v1977 = vpow.pop %v1976
        %v1978 = vmul.f32 %v1947, 1.442695
        %v1979 = vpow.pop %v1978
        %v1980 = vsub.f32 %v1516, %v1916
        %v1981 = vsub.f32 %v1517, %v1917
        %v1982 = vsub.f32 %v1518, %v1918
        %v1983 = vsub.f32 %v1519, %v1919
        %v1984 = vsub.f32 %v1520, %v1920
        %v1985 = vsub.f32 %v1521, %v1921
        %v1986 = vsub.f32 %v1522, %v1922
        %v1987 = vsub.f32 %v1523, %v1923
        %v1988 = vsub.f32 %v1524, %v1924
        %v1989 = vsub.f32 %v1525, %v1925
        %v1990 = vsub.f32 %v1526, %v1926
        %v1991 = vsub.f32 %v1527, %v1927
        %v1992 = vsub.f32 %v1528, %v1928
        %v1993 = vsub.f32 %v1529, %v1929
        %v1994 = vsub.f32 %v1530, %v1930
        %v1995 = vsub.f32 %v1531, %v1931
        %v1996 = vmul.f32 %v1980, 1.442695
        %v1997 = vpow.pop %v1996
        %v1998 = vmul.f32 %v1981, 1.442695
        %v1999 = vpow.pop %v1998
        %v2000 = vmul.f32 %v1982, 1.442695
        %v2001 = vpow.pop %v2000
        %v2002 = vmul.f32 %v1983, 1.442695
        %v2003 = vpow.pop %v2002
        %v2004 = vmul.f32 %v1984, 1.442695
        %v2005 = vpow.pop %v2004
        %v2006 = vmul.f32 %v1985, 1.442695
        %v2007 = vpow.pop %v2006
        %v2008 = vmul.f32 %v1986, 1.442695
        %v2009 = vpow.pop %v2008
        %v2010 = vmul.f32 %v1987, 1.442695
        %v2011 = vpow.pop %v2010
        %v2012 = vmul.f32 %v1988, 1.442695
        %v2013 = vpow.pop %v2012
        %v2014 = vmul.f32 %v1989, 1.442695
        %v2015 = vpow.pop %v2014
        %v2016 = vmul.f32 %v1990, 1.442695
        %v2017 = vpow.pop %v2016
        %v2018 = vmul.f32 %v1991, 1.442695
        %v2019 = vpow.pop %v2018
        %v2020 = vmul.f32 %v1992, 1.442695
        %v2021 = vpow.pop %v2020
        %v2022 = vmul.f32 %v1993, 1.442695
        %v2023 = vpow.pop %v2022
        %v2024 = vmul.f32 %v1994, 1.442695
        %v2025 = vpow.pop %v2024
        %v2026 = vmul.f32 %v1995, 1.442695
        %v2027 = vpow.pop %v2026
        %v2028 = vsub.f32 %v1884, %v1916
        %v2029 = vsub.f32 %v1885, %v1917
        %v2030 = vsub.f32 %v1886, %v1918
        %v2031 = vsub.f32 %v1887, %v1919
        %v2032 = vsub.f32 %v1888, %v1920
        %v2033 = vsub.f32 %v1889, %v1921
        %v2034 = vsub.f32 %v1890, %v1922
        %v2035 = vsub.f32 %v1891, %v1923
        %v2036 = vsub.f32 %v1892, %v1924
        %v2037 = vsub.f32 %v1893, %v1925
        %v2038 = vsub.f32 %v1894, %v1926
        %v2039 = vsub.f32 %v1895, %v1927
        %v2040 = vsub.f32 %v1896, %v1928
        %v2041 = vsub.f32 %v1897, %v1929
        %v2042 = vsub.f32 %v1898, %v1930
        %v2043 = vsub.f32 %v1899, %v1931
        %v2044 = vmul.f32 %v2028, 1.442695
        %v2045 = vpow.pop %v2044
        %v2046 = vmul.f32 %v2029, 1.442695
        %v2047 = vpow.pop %v2046
        %v2048 = vmul.f32 %v2030, 1.442695
        %v2049 = vpow.pop %v2048
        %v2050 = vmul.f32 %v2031, 1.442695
        %v2051 = vpow.pop %v2050
        %v2052 = vmul.f32 %v2032, 1.442695
        %v2053 = vpow.pop %v2052
        %v2054 = vmul.f32 %v2033, 1.442695
        %v2055 = vpow.pop %v2054
        %v2056 = vmul.f32 %v2034, 1.442695
        %v2057 = vpow.pop %v2056
        %v2058 = vmul.f32 %v2035, 1.442695
        %v2059 = vpow.pop %v2058
        %v2060 = vmul.f32 %v2036, 1.442695
        %v2061 = vpow.pop %v2060
        %v2062 = vmul.f32 %v2037, 1.442695
        %v2063 = vpow.pop %v2062
        %v2064 = vmul.f32 %v2038, 1.442695
        %v2065 = vpow.pop %v2064
        %v2066 = vmul.f32 %v2039, 1.442695
        %v2067 = vpow.pop %v2066
        %v2068 = vmul.f32 %v2040, 1.442695
        %v2069 = vpow.pop %v2068
        %v2070 = vmul.f32 %v2041, 1.442695
        %v2071 = vpow.pop %v2070
        %v2072 = vmul.f32 %v2042, 1.442695
        %v2073 = vpow.pop %v2072
        %v2074 = vmul.f32 %v2043, 1.442695
        %v2075 = vpow.pop %v2074
        %v2076 = vadd.f32 %v1949, %v1997
        %v2077 = vadd.f32 %v1951, %v1999
        %v2078 = vadd.f32 %v1953, %v2001
        %v2079 = vadd.f32 %v1955, %v2003
        %v2080 = vadd.f32 %v1957, %v2005
        %v2081 = vadd.f32 %v1959, %v2007
        %v2082 = vadd.f32 %v1961, %v2009
        %v2083 = vadd.f32 %v1963, %v2011
        %v2084 = vadd.f32 %v1965, %v2013
        %v2085 = vadd.f32 %v1967, %v2015
        %v2086 = vadd.f32 %v1969, %v2017
        %v2087 = vadd.f32 %v1971, %v2019
        %v2088 = vadd.f32 %v1973, %v2021
        %v2089 = vadd.f32 %v1975, %v2023
        %v2090 = vadd.f32 %v1977, %v2025
        %v2091 = vadd.f32 %v1979, %v2027
        %v2092 = vadd.f32 %v2076, %v2045
        %v2093 = vadd.f32 %v2077, %v2047
        %v2094 = vadd.f32 %v2078, %v2049
        %v2095 = vadd.f32 %v2079, %v2051
        %v2096 = vadd.f32 %v2080, %v2053
        %v2097 = vadd.f32 %v2081, %v2055
        %v2098 = vadd.f32 %v2082, %v2057
        %v2099 = vadd.f32 %v2083, %v2059
        %v2100 = vadd.f32 %v2084, %v2061
        %v2101 = vadd.f32 %v2085, %v2063
        %v2102 = vadd.f32 %v2086, %v2065
        %v2103 = vadd.f32 %v2087, %v2067
        %v2104 = vadd.f32 %v2088, %v2069
        %v2105 = vadd.f32 %v2089, %v2071
        %v2106 = vadd.f32 %v2090, %v2073
        %v2107 = vadd.f32 %v2091, %v2075
        %v2108 = vrcp.pop %v2092
        %v2109 = vrcp.pop %v2093
        %v2110 = vrcp.pop %v2094
        %v2111 = vrcp.pop %v2095
        %v2112 = vrcp.pop %v2096
        %v2113 = vrcp.pop %v2097
        %v2114 = vrcp.pop %v2098
        %v2115 = vrcp.pop %v2099
        %v2116 = vrcp.pop %v2100
        %v2117 = vrcp.pop %v2101
        %v2118 = vrcp.pop %v2102
        %v2119 = vrcp.pop %v2103
        %v2120 = vrcp.pop %v2104
        %v2121 = vrcp.pop %v2105
        %v2122 = vrcp.pop %v2106
        %v2123 = vrcp.pop %v2107
        %v2124 = vmul.f32 %v2092, %v2108
        %v2125 = vmul.f32 %v2093, %v2109
        %v2126 = vmul.f32 %v2094, %v2110
        %v2127 = vmul.f32 %v2095, %v2111
        %v2128 = vmul.f32 %v2096, %v2112
        %v2129 = vmul.f32 %v2097, %v2113
        %v2130 = vmul.f32 %v2098, %v2114
        %v2131 = vmul.f32 %v2099, %v2115
        %v2132 = vmul.f32 %v2100, %v2116
        %v2133 = vmul.f32 %v2101, %v2117
        %v2134 = vmul.f32 %v2102, %v2118
        %v2135 = vmul.f32 %v2103, %v2119
        %v2136 = vmul.f32 %v2104, %v2120
        %v2137 = vmul.f32 %v2105, %v2121
        %v2138 = vmul.f32 %v2106, %v2122
        %v2139 = vmul.f32 %v2107, %v2123
        %v2140 = vsub.f32 2.0, %v2124
        %v2141 = vsub.f32 2.0, %v2125
        %v2142 = vsub.f32 2.0, %v2126
        %v2143 = vsub.f32 2.0, %v2127
        %v2144 = vsub.f32 2.0, %v2128
        %v2145 = vsub.f32 2.0, %v2129
        %v2146 = vsub.f32 2.0, %v2130
        %v2147 = vsub.f32 2.0, %v2131
        %v2148 = vsub.f32 2.0, %v2132
        %v2149 = vsub.f32 2.0, %v2133
        %v2150 = vsub.f32 2.0, %v2134
        %v2151 = vsub.f32 2.0, %v2135
        %v2152 = vsub.f32 2.0, %v2136
        %v2153 = vsub.f32 2.0, %v2137
        %v2154 = vsub.f32 2.0, %v2138
        %v2155 = vsub.f32 2.0, %v2139
        %v2156 = vmul.f32 %v2108, %v2140
        %v2157 = vmul.f32 %v2109, %v2141
        %v2158 = vmul.f32 %v2110, %v2142
        %v2159 = vmul.f32 %v2111, %v2143
        %v2160 = vmul.f32 %v2112, %v2144
        %v2161 = vmul.f32 %v2113, %v2145
        %v2162 = vmul.f32 %v2114, %v2146
        %v2163 = vmul.f32 %v2115, %v2147
        %v2164 = vmul.f32 %v2116, %v2148
        %v2165 = vmul.f32 %v2117, %v2149
        %v2166 = vmul.f32 %v2118, %v2150
        %v2167 = vmul.f32 %v2119, %v2151
        %v2168 = vmul.f32 %v2120, %v2152
        %v2169 = vmul.f32 %v2121, %v2153
        %v2170 = vmul.f32 %v2122, %v2154
        %v2171 = vmul.f32 %v2123, %v2155
        %v2172 = vmul.f32 %v1949, %v2156
        %v2173 = vmul.f32 %v1951, %v2157
        %v2174 = vmul.f32 %v1953, %v2158
        %v2175 = vmul.f32 %v1955, %v2159
        %v2176 = vmul.f32 %v1957, %v2160
        %v2177 = vmul.f32 %v1959, %v2161
        %v2178 = vmul.f32 %v1961, %v2162
        %v2179 = vmul.f32 %v1963, %v2163
        %v2180 = vmul.f32 %v1965, %v2164
        %v2181 = vmul.f32 %v1967, %v2165
        %v2182 = vmul.f32 %v1969, %v2166
        %v2183 = vmul.f32 %v1971, %v2167
        %v2184 = vmul.f32 %v1973, %v2168
        %v2185 = vmul.f32 %v1975, %v2169
        %v2186 = vmul.f32 %v1977, %v2170
        %v2187 = vmul.f32 %v1979, %v2171
        %v2188 = vmul.f32 %v1997, %v2156
        %v2189 = vmul.f32 %v1999, %v2157
        %v2190 = vmul.f32 %v2001, %v2158
        %v2191 = vmul.f32 %v2003, %v2159
        %v2192 = vmul.f32 %v2005, %v2160
        %v2193 = vmul.f32 %v2007, %v2161
        %v2194 = vmul.f32 %v2009, %v2162
        %v2195 = vmul.f32 %v2011, %v2163
        %v2196 = vmul.f32 %v2013, %v2164
        %v2197 = vmul.f32 %v2015, %v2165
        %v2198 = vmul.f32 %v2017, %v2166
        %v2199 = vmul.f32 %v2019, %v2167
        %v2200 = vmul.f32 %v2021, %v2168
        %v2201 = vmul.f32 %v2023, %v2169
        %v2202 = vmul.f32 %v2025, %v2170
        %v2203 = vmul.f32 %v2027, %v2171
        %v2204 = vmul.f32 %v2045, %v2156
        %v2205 = vmul.f32 %v2047, %v2157
        %v2206 = vmul.f32 %v2049, %v2158
        %v2207 = vmul.f32 %v2051, %v2159
        %v2208 = vmul.f32 %v2053, %v2160
        %v2209 = vmul.f32 %v2055, %v2161
        %v2210 = vmul.f32 %v2057, %v2162
        %v2211 = vmul.f32 %v2059, %v2163
        %v2212 = vmul.f32 %v2061, %v2164
        %v2213 = vmul.f32 %v2063, %v2165
        %v2214 = vmul.f32 %v2065, %v2166
        %v2215 = vmul.f32 %v2067, %v2167
        %v2216 = vmul.f32 %v2069, %v2168
        %v2217 = vmul.f32 %v2071, %v2169
        %v2218 = vmul.f32 %v2073, %v2170
        %v2219 = vmul.f32 %v2075, %v2171
        %v2220 = vmul.f32 %v2172, %v882
        %v2221 = vmul.f32 %v2173, %v892
        %v2222 = vmul.f32 %v2174, %v902
        %v2223 = vmul.f32 %v2175, %v912
        %v2224 = vmul.f32 %v2176, %v922
        %v2225 = vmul.f32 %v2177, %v932
        %v2226 = vmul.f32 %v2178, %v942
        %v2227 = vmul.f32 %v2179, %v952
        %v2228 = vmul.f32 %v2180, %v962
        %v2229 = vmul.f32 %v2181, %v972
        %v2230 = vmul.f32 %v2182, %v982
        %v2231 = vmul.f32 %v2183, %v992
        %v2232 = vmul.f32 %v2184, %v1002
        %v2233 = vmul.f32 %v2185, %v1012
        %v2234 = vmul.f32 %v2186, %v1022
        %v2235 = vmul.f32 %v2187, %v1032
        %v2236 = vmul.f32 %v2220, %v793
        %v2237 = vmul.f32 %v2221, %v794
        %v2238 = vmul.f32 %v2222, %v795
        %v2239 = vmul.f32 %v2223, %v796
        %v2240 = vmul.f32 %v2224, %v797
        %v2241 = vmul.f32 %v2225, %v798
        %v2242 = vmul.f32 %v2226, %v799
        %v2243 = vmul.f32 %v2227, %v800
        %v2244 = vmul.f32 %v2228, %v801
        %v2245 = vmul.f32 %v2229, %v802
        %v2246 = vmul.f32 %v2230, %v803
        %v2247 = vmul.f32 %v2231, %v804
        %v2248 = vmul.f32 %v2232, %v805
        %v2249 = vmul.f32 %v2233, %v806
        %v2250 = vmul.f32 %v2234, %v807
        %v2251 = vmul.f32 %v2235, %v808
        %v2252 = vadd.f32 %v709, %v2236
        %v2253 = vadd.f32 %v710, %v2237
        %v2254 = vadd.f32 %v711, %v2238
        %v2255 = vadd.f32 %v712, %v2239
        %v2256 = vadd.f32 %v713, %v2240
        %v2257 = vadd.f32 %v714, %v2241
        %v2258 = vadd.f32 %v715, %v2242
        %v2259 = vadd.f32 %v716, %v2243
        %v2260 = vadd.f32 %v717, %v2244
        %v2261 = vadd.f32 %v718, %v2245
        %v2262 = vadd.f32 %v719, %v2246
        %v2263 = vadd.f32 %v720, %v2247
        %v2264 = vadd.f32 %v721, %v2248
        %v2265 = vadd.f32 %v722, %v2249
        %v2266 = vadd.f32 %v723, %v2250
        %v2267 = vadd.f32 %v724, %v2251
        %v2268 = vmul.f32 %v2188, %v1253
        %v2269 = vmul.f32 %v2189, %v1263
        %v2270 = vmul.f32 %v2190, %v1273
        %v2271 = vmul.f32 %v2191, %v1283
        %v2272 = vmul.f32 %v2192, %v1293
        %v2273 = vmul.f32 %v2193, %v1303
        %v2274 = vmul.f32 %v2194, %v1313
        %v2275 = vmul.f32 %v2195, %v1323
        %v2276 = vmul.f32 %v2196, %v1333
        %v2277 = vmul.f32 %v2197, %v1343
        %v2278 = vmul.f32 %v2198, %v1353
        %v2279 = vmul.f32 %v2199, %v1363
        %v2280 = vmul.f32 %v2200, %v1373
        %v2281 = vmul.f32 %v2201, %v1383
        %v2282 = vmul.f32 %v2202, %v1393
        %v2283 = vmul.f32 %v2203, %v1403
        %v2284 = vmul.f32 %v2268, %v1164
        %v2285 = vmul.f32 %v2269, %v1165
        %v2286 = vmul.f32 %v2270, %v1166
        %v2287 = vmul.f32 %v2271, %v1167
        %v2288 = vmul.f32 %v2272, %v1168
        %v2289 = vmul.f32 %v2273, %v1169
        %v2290 = vmul.f32 %v2274, %v1170
        %v2291 = vmul.f32 %v2275, %v1171
        %v2292 = vmul.f32 %v2276, %v1172
        %v2293 = vmul.f32 %v2277, %v1173
        %v2294 = vmul.f32 %v2278, %v1174
        %v2295 = vmul.f32 %v2279, %v1175
        %v2296 = vmul.f32 %v2280, %v1176
        %v2297 = vmul.f32 %v2281, %v1177
        %v2298 = vmul.f32 %v2282, %v1178
        %v2299 = vmul.f32 %v2283, %v1179
        %v2300 = vadd.f32 %v2252, %v2284
        %v2301 = vadd.f32 %v2253, %v2285
        %v2302 = vadd.f32 %v2254, %v2286
        %v2303 = vadd.f32 %v2255, %v2287
        %v2304 = vadd.f32 %v2256, %v2288
        %v2305 = vadd.f32 %v2257, %v2289
        %v2306 = vadd.f32 %v2258, %v2290
        %v2307 = vadd.f32 %v2259, %v2291
        %v2308 = vadd.f32 %v2260, %v2292
        %v2309 = vadd.f32 %v2261, %v2293
        %v2310 = vadd.f32 %v2262, %v2294
        %v2311 = vadd.f32 %v2263, %v2295
        %v2312 = vadd.f32 %v2264, %v2296
        %v2313 = vadd.f32 %v2265, %v2297
        %v2314 = vadd.f32 %v2266, %v2298
        %v2315 = vadd.f32 %v2267, %v2299
        %v2316 = vmul.f32 %v2204, %v1621
        %v2317 = vmul.f32 %v2205, %v1631
        %v2318 = vmul.f32 %v2206, %v1641
        %v2319 = vmul.f32 %v2207, %v1651
        %v2320 = vmul.f32 %v2208, %v1661
        %v2321 = vmul.f32 %v2209, %v1671
        %v2322 = vmul.f32 %v2210, %v1681
        %v2323 = vmul.f32 %v2211, %v1691
        %v2324 = vmul.f32 %v2212, %v1701
        %v2325 = vmul.f32 %v2213, %v1711
        %v2326 = vmul.f32 %v2214, %v1721
        %v2327 = vmul.f32 %v2215, %v1731
        %v2328 = vmul.f32 %v2216, %v1741
        %v2329 = vmul.f32 %v2217, %v1751
        %v2330 = vmul.f32 %v2218, %v1761
        %v2331 = vmul.f32 %v2219, %v1771
        %v2332 = vmul.f32 %v2316, %v1532
        %v2333 = vmul.f32 %v2317, %v1533
        %v2334 = vmul.f32 %v2318, %v1534
        %v2335 = vmul.f32 %v2319, %v1535
        %v2336 = vmul.f32 %v2320, %v1536
        %v2337 = vmul.f32 %v2321, %v1537
        %v2338 = vmul.f32 %v2322, %v1538
        %v2339 = vmul.f32 %v2323, %v1539
        %v2340 = vmul.f32 %v2324, %v1540
        %v2341 = vmul.f32 %v2325, %v1541
        %v2342 = vmul.f32 %v2326, %v1542
        %v2343 = vmul.f32 %v2327, %v1543
        %v2344 = vmul.f32 %v2328, %v1544
        %v2345 = vmul.f32 %v2329, %v1545
        %v2346 = vmul.f32 %v2330, %v1546
        %v2347 = vmul.f32 %v2331, %v1547
        %v2348 = vadd.f32 %v2300, %v2332
        %v2349 = vadd.f32 %v2301, %v2333
        %v2350 = vadd.f32 %v2302, %v2334
        %v2351 = vadd.f32 %v2303, %v2335
        %v2352 = vadd.f32 %v2304, %v2336
        %v2353 = vadd.f32 %v2305, %v2337
        %v2354 = vadd.f32 %v2306, %v2338
        %v2355 = vadd.f32 %v2307, %v2339
        %v2356 = vadd.f32 %v2308, %v2340
        %v2357 = vadd.f32 %v2309, %v2341
        %v2358 = vadd.f32 %v2310, %v2342
        %v2359 = vadd.f32 %v2311, %v2343
        %v2360 = vadd.f32 %v2312, %v2344
        %v2361 = vadd.f32 %v2313, %v2345
        %v2362 = vadd.f32 %v2314, %v2346
        %v2363 = vadd.f32 %v2315, %v2347
        %2364 = vst [vmem:[%s453] sm:$0xff] %v2348
        %2365 = vst [vmem:[%s453 + $0x8] sm:$0xff] %v2349
        %2366 = vst [vmem:[%s453 + $0x10] sm:$0xff] %v2350
        %2367 = vst [vmem:[%s453 + $0x18] sm:$0xff] %v2351
        %2368 = vst [vmem:[%s453 + $0x20] sm:$0xff] %v2352
        %2369 = vst [vmem:[%s453 + $0x28] sm:$0xff] %v2353
        %2370 = vst [vmem:[%s453 + $0x30] sm:$0xff] %v2354
        %2371 = vst [vmem:[%s453 + $0x38] sm:$0xff] %v2355
        %2372 = vst [vmem:[%s453 + $0x40] sm:$0xff] %v2356
        %2373 = vst [vmem:[%s453 + $0x48] sm:$0xff] %v2357
        %2374 = vst [vmem:[%s453 + $0x50] sm:$0xff] %v2358
        %2375 = vst [vmem:[%s453 + $0x58] sm:$0xff] %v2359
        %2376 = vst [vmem:[%s453 + $0x60] sm:$0xff] %v2360
        %2377 = vst [vmem:[%s453 + $0x68] sm:$0xff] %v2361
        %2378 = vst [vmem:[%s453 + $0x70] sm:$0xff] %v2362
        %2379 = vst [vmem:[%s453 + $0x78] sm:$0xff] %v2363
        %vm2380 = vcmask 7168
        %v2381 = vsel %vm2380, %v2172, %v2188
        %v2382 = vsel %vm2380, %v2173, %v2189
        %v2383 = vsel %vm2380, %v2174, %v2190
        %v2384 = vsel %vm2380, %v2175, %v2191
        %v2385 = vsel %vm2380, %v2176, %v2192
        %v2386 = vsel %vm2380, %v2177, %v2193
        %v2387 = vsel %vm2380, %v2178, %v2194
        %v2388 = vsel %vm2380, %v2179, %v2195
        %v2389 = vsel %vm2380, %v2180, %v2196
        %v2390 = vsel %vm2380, %v2181, %v2197
        %v2391 = vsel %vm2380, %v2182, %v2198
        %v2392 = vsel %vm2380, %v2183, %v2199
        %v2393 = vsel %vm2380, %v2184, %v2200
        %v2394 = vsel %vm2380, %v2185, %v2201
        %v2395 = vsel %vm2380, %v2186, %v2202
        %v2396 = vsel %vm2380, %v2187, %v2203
        %vm2397 = vcmask 15360
        %v2398 = vsel %vm2397, %v2381, %v2204
        %v2399 = vsel %vm2397, %v2382, %v2205
        %v2400 = vsel %vm2397, %v2383, %v2206
        %v2401 = vsel %vm2397, %v2384, %v2207
        %v2402 = vsel %vm2397, %v2385, %v2208
        %v2403 = vsel %vm2397, %v2386, %v2209
        %v2404 = vsel %vm2397, %v2387, %v2210
        %v2405 = vsel %vm2397, %v2388, %v2211
        %v2406 = vsel %vm2397, %v2389, %v2212
        %v2407 = vsel %vm2397, %v2390, %v2213
        %v2408 = vsel %vm2397, %v2391, %v2214
        %v2409 = vsel %vm2397, %v2392, %v2215
        %v2410 = vsel %vm2397, %v2393, %v2216
        %v2411 = vsel %vm2397, %v2394, %v2217
        %v2412 = vsel %vm2397, %v2395, %v2218
        %v2413 = vsel %vm2397, %v2396, %v2219
        %2414 = vxpose.xlu0.b32.start [1/16] %v2398, 128
        %2415 = vxpose.xlu0.b32.cont [2/16] %v2399, 128
        %2416 = vxpose.xlu0.b32.cont [3/16] %v2400, 128
        %2417 = vxpose.xlu0.b32.cont [4/16] %v2401, 128
        %2418 = vxpose.xlu0.b32.cont [5/16] %v2402, 128
        %2419 = vxpose.xlu0.b32.cont [6/16] %v2403, 128
        %2420 = vxpose.xlu0.b32.cont [7/16] %v2404, 128
        %2421 = vxpose.xlu0.b32.cont [8/16] %v2405, 128
        %2422 = vxpose.xlu0.b32.cont [9/16] %v2406, 128
        %2423 = vxpose.xlu0.b32.cont [10/16] %v2407, 128
        %2424 = vxpose.xlu0.b32.cont [11/16] %v2408, 128
        %2425 = vxpose.xlu0.b32.cont [12/16] %v2409, 128
        %2426 = vxpose.xlu0.b32.cont [13/16] %v2410, 128
        %2427 = vxpose.xlu0.b32.cont [14/16] %v2411, 128
        %2428 = vxpose.xlu0.b32.cont [15/16] %v2412, 128
        %2429 = vxpose.xlu0.b32.end [16/16] %v2413, 128
        %v2430 = vpop.trf.xlu0
        %v2431 = vpop.trf.xlu0
        %v2432 = vpop.trf.xlu0
        %v2433 = vpop.trf.xlu0
        %v2434 = vpop.trf.xlu0
        %v2435 = vpop.trf.xlu0
        %v2436 = vpop.trf.xlu0
        %v2437 = vpop.trf.xlu0
        %v2438 = vpop.trf.xlu0
        %v2439 = vpop.trf.xlu0
        %v2440 = vpop.trf.xlu0
        %v2441 = vpop.trf.xlu0
        %v2442 = vpop.trf.xlu0
        %v2443 = vpop.trf.xlu0
        %v2444 = vpop.trf.xlu0
        %v2445 = vpop.trf.xlu0
        %2446 = vst [vmem:[%s460] sm:$0x7] %v2430
        %s2447 = sand.u32 %s211, 1
        %s2448 = scalar_lea.sflag [#allocation5], %s2447
        %s2449 = sand.u32 %s211, 1
        %s2450 = smul.addr %s2449, 128
        %s2451 = scalar_lea.vmem [#allocation11], %s2450
        %s2452 = sand.u32 %s237, 1
        %s2453 = scalar_lea.sflag [#allocation13], %s2452
        %s2454 = sand.u32 %s237, 1
        %s2455 = smul.addr %s2454, 4
        %s2456 = scalar_lea.vmem [#allocation12], %s2455
        // Predicated region
        $region65: #{tpu_custom_call.1} parent=47 // pred_check
          %p2457 = pneg %p221
        $region66: #{tpu_custom_call.1} parent=47 // pred_check_branch
          %2459 = sbr.rel (%p2457) target = $region68
        $region67: #{tpu_custom_call.1} parent=47 // pred_region
          %s2460 = smul.u32 16, %s36
          %2462 = vsyncadd %s2448, 0
          %s2463 = smul.addr %s2460, 8
          %s2464 = scalar_lea.hbm %s7, %s2463
          %s2465 = sshll.u32 %s2451, 4
          %s2466 = int_to_ptr.vmem [resolvable:$true] %s2465
          %s2467 = sshll.u32 %s2464, 4
          %s2468 = int_to_ptr.hbm [resolvable:$true] %s2467
          %2473 = dma.vmem_to_hbm [thread:$0]  %s2466, 2048, %s2468, %s2448, 128, 128, 8
        $region68: #{tpu_custom_call.1} parent=47 // pred_fallthru
          _
        // Predicated region
        $region69: #{tpu_custom_call.1} parent=47 // pred_check
          %p2474 = pneg %p247
        $region70: #{tpu_custom_call.1} parent=47 // pred_check_branch
          %2476 = sbr.rel (%p2474) target = $region72
        $region71: #{tpu_custom_call.1} parent=47 // pred_region
          %2478 = vsyncadd %s2453, 0
          %s2479 = smul.addr %s36, 4
          %s2480 = scalar_lea.hbm %s8, %s2479
          %s2482 = sshll.u32 %s2456, 4
          %s2483 = int_to_ptr.vmem [resolvable:$true] %s2482
          %s2484 = sshll.u32 %s2480, 4
          %s2485 = int_to_ptr.hbm [resolvable:$true] %s2484
          %2487 = dma.vmem_to_hbm [thread:$0]  %s2483, 64, %s2485, %s2453
        $region72: #{tpu_custom_call.1} parent=47 // pred_fallthru
          _
      $region48: #{tpu_custom_call.1} parent=5 // pred_fallthru
        _
      %p2488 = scmp.le.s32.totalorder 2, %s31
      // Predicated region
      $region73: #{tpu_custom_call.1} parent=5 // pred_check
        %p2489 = pneg %p2488
      $region74: #{tpu_custom_call.1} parent=5 // pred_check_branch
        %2491 = sbr.rel (%p2489) target = $region76
      $region75: #{tpu_custom_call.1} parent=5 // pred_region
        %s2492 = ssub.s32 %s31, 2
        // Predicated region
        $region77: #{tpu_custom_call.1} parent=75 // pred_check
          %p2493 = pneg %p227
        $region78: #{tpu_custom_call.1} parent=75 // pred_check_branch
          %2495 = sbr.rel (%p2493) target = $region80
        $region79: #{tpu_custom_call.1} parent=75 // pred_region
          %s2496 = sand.u32 %s212, 1
          %s2497 = scalar_lea.sflag [#allocation5], %s2496
          %s2498 = sand.u32 %s212, 1
          %s2499 = smul.addr %s2498, 128
          %s2500 = scalar_lea.vmem [#allocation11], %s2499
          %2502 = dma.done %s2497, 2048
        $region80: #{tpu_custom_call.1} parent=75 // pred_fallthru
          _
        // Predicated region
        $region81: #{tpu_custom_call.1} parent=75 // pred_check
          %p2503 = pneg %p253
        $region82: #{tpu_custom_call.1} parent=75 // pred_check_branch
          %2505 = sbr.rel (%p2503) target = $region84
        $region83: #{tpu_custom_call.1} parent=75 // pred_region
          %s2506 = sand.u32 %s238, 1
          %s2507 = scalar_lea.sflag [#allocation13], %s2506
          %s2508 = sand.u32 %s238, 1
          %s2509 = smul.addr %s2508, 4
          %s2510 = scalar_lea.vmem [#allocation12], %s2509
          %2512 = dma.done %s2507, 64
        $region84: #{tpu_custom_call.1} parent=75 // pred_fallthru
          _
      $region76: #{tpu_custom_call.1} parent=5 // pred_fallthru
        _
    $region6: #{tpu_custom_call.1} parent=1 // loop_footer
      %s35 = sadd.s32 1, %s31
    $region7: #{tpu_custom_call.1} parent=1 // loop_footer_branch
      %30 = sbr.rel target = $region3
    $region8: #{tpu_custom_call.1} parent=1 // loop_exit
      _
    %2513 = vsyncpa [#allocation4], 1
    %s2514 = scalar_lea.sflag [#allocation4], 1
    %2515 = vsyncpa %s2514, 1
    %2516 = vsyncpa [#allocation7], 1
    %s2517 = scalar_lea.sflag [#allocation7], 1
    %2518 = vsyncpa %s2517, 1
    %2519 = vsyncpa [#allocation10], 1
    %s2520 = scalar_lea.sflag [#allocation10], 1
    %2521 = vsyncpa %s2520, 1
    %2522 = vsyncpa [#allocation5], 1
    %s2523 = scalar_lea.sflag [#allocation5], 1
    %2524 = vsyncpa %s2523, 1
    %2525 = vsyncpa [#allocation13], 1
    %s2526 = scalar_lea.sflag [#allocation13], 1
    %2527 = vsyncpa %s2526, 1

</llo_original>
